<compile_context>
chip_gen: v7x
topology: tpu7x:2x2x1
jax: 0.10.0
libtpu: 0.0.40
codegen_flags: <defaults>
</compile_context>

<pallas_src>
import functools

import jax
import jax.numpy as jnp
from jax import lax
from jax.experimental import pallas as pl
from jax.experimental.pallas import tpu as pltpu


# ----------------------------------------------------------------------------
# Fused TemporalBlock kernel
# ----------------------------------------------------------------------------
def _dilated_conv_acc(ext_ref, w_ref, tl, dilation, K):
    """sum_k W[k] @ ext[:, k*d : k*d + tl]  -> (C_out, tl) float32.

    ext holds [carry/left-pad (P cols) | current tile (tl cols)], so tap k's
    window is a static ref-level slice (no full-buffer load first).
    """
    acc = None
    for k in range(K):                                    # small static K -> unrolled
        xk = ext_ref[:, k * dilation: k * dilation + tl]  # (C, tl)
        part = jnp.dot(w_ref[k], xk, preferred_element_type=jnp.float32)
        acc = part if acc is None else acc + part
    return acc


def _temporal_block_kernel(x_ref, w1_ref, b1_ref, w2_ref, b2_ref, *rest,
                           dilation, K, has_downsample, carry):
    if has_downsample:
        wd_ref, bd_ref, o_ref, x_ext, h_ext = rest
    else:
        o_ref, x_ext, h_ext = rest

    tl = o_ref.shape[-1]
    P = (K - 1) * dilation
    l = pl.program_id(1)

    if P > 0:
        @pl.when(l == 0)
        def _init_causal_pad():
            # Explicit causal left-pad: zero the halo columns at the start of
            # every batch element (scratch is NOT implicitly zeroed).
            x_ext[:, :P] = jnp.zeros((x_ext.shape[0], P), x_ext.dtype)
            h_ext[:, :P] = jnp.zeros((h_ext.shape[0], P), h_ext.dtype)

    x_tile = x_ref[0]                                 # (C_in, tl) bf16
    x_ext[:, P:] = x_tile

    # Stage 1: h = relu(conv1(x) + b1)   (dropout1 = identity in eval mode)
    acc1 = _dilated_conv_acc(x_ext, w1_ref, tl, dilation, K) + b1_ref[...]
    h_tile = jnp.maximum(acc1, 0.0)
    h_ext[:, P:] = h_tile.astype(h_ext.dtype)         # stays in VMEM only

    # Stage 2: o = relu(conv2(h) + b2)   (dropout2 = identity in eval mode)
    acc2 = _dilated_conv_acc(h_ext, w2_ref, tl, dilation, K) + b2_ref[...]
    o = jnp.maximum(acc2, 0.0)

    # Residual path (1x1 downsample fused) + final block relu.
    if has_downsample:
        res = jnp.dot(wd_ref[...], x_tile,
                      preferred_element_type=jnp.float32) + bd_ref[...]
    else:
        res = x_tile.astype(jnp.float32)

    o_ref[0] = jnp.maximum(o + res, 0.0).astype(o_ref.dtype)

    if carry and P > 0:
        # Carry the last P columns of x and h to the next L tile (aligned
        # lane-offset reads: tl is a multiple of 128).
        x_ext[:, :P] = x_ext[:, tl:tl + P]
        h_ext[:, :P] = h_ext[:, tl:tl + P]


# ----------------------------------------------------------------------------
# Wrapper: one pallas_call per TemporalBlock
# ----------------------------------------------------------------------------
def _weight_norm(v, g):
    # PyTorch weight_norm(dim=0): per-output-channel L2 norm over (C_in, K).
    norm = jnp.sqrt(jnp.sum(v * v, axis=(1, 2), keepdims=True))
    return g * v / norm


def _choose_l_tile(l_pad, halo, target=1024):
    """Largest multiple of 128 <= target dividing l_pad and >= halo, else l_pad."""
    tl = min(target, l_pad)
    tl -= tl % 128
    while tl >= 128:
        if l_pad % tl == 0 and tl >= halo:
            return tl
        tl -= 128
    return l_pad


def temporal_block_forward(x, p, *, dilation, l_tile):
    """x: (N, C_in, L_pad) in compute dtype (bf16); returns (N, C_out, L_pad)."""
    N, C_in, Lp = x.shape
    cdt = x.dtype

    w1 = _weight_norm(p["v1"], p["g1"])              # (C_out, C_in, K) f32
    w2 = _weight_norm(p["v2"], p["g2"])              # (C_out, C_out, K) f32
    C_out, _, K = w1.shape
    P = (K - 1) * dilation

    assert Lp % l_tile == 0
    nL = Lp // l_tile
    carry = nL > 1
    if carry:
        assert l_tile >= P, "L tile smaller than conv halo"

    # (K, C_out, C_in): contraction dim on lanes of the activation operand.
    w1k = jnp.transpose(w1, (2, 0, 1)).astype(cdt)
    w2k = jnp.transpose(w2, (2, 0, 1)).astype(cdt)
    b1 = jnp.reshape(p["b1"], (C_out, 1)).astype(jnp.float32)
    b2 = jnp.reshape(p["b2"], (C_out, 1)).astype(jnp.float32)

    has_ds = p["wd"] is not None

    in_specs = [
        pl.BlockSpec((1, C_in, l_tile), lambda n, l: (n, 0, l)),
        pl.BlockSpec((K, C_out, C_in), lambda n, l: (0, 0, 0)),
        pl.BlockSpec((C_out, 1), lambda n, l: (0, 0)),
        pl.BlockSpec((K, C_out, C_out), lambda n, l: (0, 0, 0)),
        pl.BlockSpec((C_out, 1), lambda n, l: (0, 0)),
    ]
    args = [x, w1k, b1, w2k, b2]
    if has_ds:
        wd = p["wd"][:, :, 0].astype(cdt)            # (C_out, C_in) 1x1 conv
        bd = jnp.reshape(p["bd"], (C_out, 1)).astype(jnp.float32)
        in_specs += [pl.BlockSpec((C_out, C_in), lambda n, l: (0, 0)),
                     pl.BlockSpec((C_out, 1), lambda n, l: (0, 0))]
        args += [wd, bd]

    kernel = functools.partial(_temporal_block_kernel, dilation=dilation, K=K,
                               has_downsample=has_ds, carry=carry)

    flops = 2 * N * Lp * K * C_out * (C_in + C_out)
    if has_ds:
        flops += 2 * N * Lp * C_out * C_in
    itemsize = jnp.dtype(cdt).itemsize
    bytes_io = ((x.size + N * C_out * Lp + w1k.size + w2k.size) * itemsize
                + (b1.size + b2.size) * 4)

    return pl.pallas_call(
        kernel,
        out_shape=jax.ShapeDtypeStruct((N, C_out, Lp), cdt),
        grid_spec=pltpu.PrefetchScalarGridSpec(
            num_scalar_prefetch=0,
            grid=(N, nL),
            in_specs=in_specs,
            out_specs=pl.BlockSpec((1, C_out, l_tile), lambda n, l: (n, 0, l)),
            scratch_shapes=[pltpu.VMEM((C_in, l_tile + P), cdt),   # x halo+tile
                            pltpu.VMEM((C_out, l_tile + P), cdt)], # h halo+tile
        ),
        compiler_params=pltpu.CompilerParams(
            # L axis carries scratch state -> "arbitrary"; batch "parallel".
            dimension_semantics=("parallel", "arbitrary"),
            vmem_limit_bytes=48 * 1024 * 1024),
        cost_estimate=pl.CostEstimate(
            flops=int(flops), transcendentals=0, bytes_accessed=int(bytes_io)),
    )(*args)


# ----------------------------------------------------------------------------
# TCN forward (weight_norm + TemporalBlock stack)
# ----------------------------------------------------------------------------
def tcn_forward(x, params, *, compute_dtype=jnp.bfloat16, l_tile_target=1024):
    N, C, L = x.shape
    orig_dtype = x.dtype
    # Pad L up to a multiple of 128 ONCE (lane-dense stores). The conv is
    # causal, so right-pad junk never contaminates columns < L.
    L_pad = max(128, ((L + 127) // 128) * 128)
    xp = jnp.pad(x, ((0, 0), (0, 0), (0, L_pad - L))) if L_pad != L else x
    xp = xp.astype(compute_dtype)
    for i, p in enumerate(params):
        d = 2 ** i
        K = p["v1"].shape[-1]
        tl = _choose_l_tile(L_pad, (K - 1) * d, l_tile_target)
        # TODO(synk): training-mode dropout (pltpu.prng_*) not implemented; eval semantics.
        xp = temporal_block_forward(xp, p, dilation=d, l_tile=tl)
    return xp[:, :, :L].astype(orig_dtype)


def init_params(key, num_inputs, num_channels, kernel_size):
    params = []
    c_in = num_inputs
    for c_out in num_channels:
        key, k1, k2, k3, k4, k5, k6, k7, k8 = jax.random.split(key, 9)
        params.append({
            "v1": 0.01 * jax.random.normal(k1, (c_out, c_in, kernel_size), jnp.float32),
            "g1": 1.0 + 0.1 * jax.random.normal(k2, (c_out, 1, 1), jnp.float32),
            "b1": 0.1 * jax.random.normal(k3, (c_out,), jnp.float32),
            "v2": 0.01 * jax.random.normal(k4, (c_out, c_out, kernel_size), jnp.float32),
            "g2": 1.0 + 0.1 * jax.random.normal(k5, (c_out, 1, 1), jnp.float32),
            "b2": 0.1 * jax.random.normal(k6, (c_out,), jnp.float32),
            "wd": (0.01 * jax.random.normal(k7, (c_out, c_in, 1), jnp.float32)
                   if c_in != c_out else None),
            "bd": (0.1 * jax.random.normal(k8, (c_out,), jnp.float32)
                   if c_in != c_out else None),
        })
        c_in = c_out
    return params


# ----------------------------------------------------------------------------
# Pure-JAX f32 reference (== PyTorch forward in eval mode)
# ----------------------------------------------------------------------------
def _ref_conv_chomp(x, w, b, dilation):
    K = w.shape[-1]
    pad = (K - 1) * dilation
    y = lax.conv_general_dilated(
        x, w, window_strides=(1,), padding=[(pad, pad)],
        rhs_dilation=(dilation,), dimension_numbers=("NCH", "OIH", "NCH"))
    y = y[:, :, : x.shape[-1]]          # Chomp1d
    return y + b[None, :, None]


def tcn_reference(x, params):
    for i, p in enumerate(params):
        d = 2 ** i
        w1 = _weight_norm(p["v1"], p["g1"])
        w2 = _weight_norm(p["v2"], p["g2"])
        h = jax.nn.relu(_ref_conv_chomp(x, w1, p["b1"], d))
        o = jax.nn.relu(_ref_conv_chomp(h, w2, p["b2"], d))
        res = x if p["wd"] is None else _ref_conv_chomp(x, p["wd"], p["bd"], 1)
        x = jax.nn.relu(o + res)
    return x


if __name__ == "__main__":
    key = jax.random.PRNGKey(0)
    N, C_in, L = 2, 4, 16
    num_channels = (8, 8)     # level 0: 4->8 (downsample path), level 1: 8->8 (identity residual)
    kernel_size = 2

    key, kx, kp = jax.random.split(key, 3)
    x = jax.random.normal(kx, (N, C_in, L), dtype=jnp.float32)
    params = init_params(kp, C_in, num_channels, kernel_size)

    out = jax.block_until_ready(jax.jit(tcn_forward)(x, params))
    ref = tcn_reference(x, params)

    assert out.shape == (N, num_channels[-1], L), out.shape
    assert out.dtype == x.dtype
    err = float(jnp.max(jnp.abs(out - ref)))
    # Tolerance covers bf16 activations / MXU bf16 inputs (f32 accumulation).
    assert err < 5e-2, f"max |pallas - reference| = {err}"
    print("KERNEL_OK")
</pallas_src>

<mosaic_0001>
module attributes {stable_mosaic.version = 11 : i64} {
  func.func @_temporal_block_kernel(%arg0: i32, %arg1: i32, %arg2: memref<1x4x128xbf16, #tpu.memory_space<vmem>>, %arg3: memref<2x8x4xbf16, #tpu.memory_space<vmem>>, %arg4: memref<8x1xf32, #tpu.memory_space<vmem>>, %arg5: memref<2x8x8xbf16, #tpu.memory_space<vmem>>, %arg6: memref<8x1xf32, #tpu.memory_space<vmem>>, %arg7: memref<8x4xbf16, #tpu.memory_space<vmem>>, %arg8: memref<8x1xf32, #tpu.memory_space<vmem>>, %arg9: memref<1x8x128xbf16, #tpu.memory_space<vmem>>, %arg10: memref<4x129xbf16, #tpu.memory_space<vmem>>, %arg11: memref<8x129xbf16, #tpu.memory_space<vmem>>) attributes {dimension_semantics = [#tpu.dimension_semantics<parallel>, #tpu.dimension_semantics<arbitrary>], iteration_bounds = array<i64: 2, 1>, scalar_prefetch = 0 : i64, scratch_operands = 2 : i64, tpu.core_type = #tpu.core_type<tc>, window_params = [{transform_indices = @transform_0, window_bounds = array<i64: 1, 4, 128>}, {pipeline_mode = #tpu.pipeline_mode<synchronous>, transform_indices = @transform_1, window_bounds = array<i64: 2, 8, 4>}, {pipeline_mode = #tpu.pipeline_mode<synchronous>, transform_indices = @transform_2, window_bounds = array<i64: 8, 1>}, {pipeline_mode = #tpu.pipeline_mode<synchronous>, transform_indices = @transform_3, window_bounds = array<i64: 2, 8, 8>}, {pipeline_mode = #tpu.pipeline_mode<synchronous>, transform_indices = @transform_4, window_bounds = array<i64: 8, 1>}, {pipeline_mode = #tpu.pipeline_mode<synchronous>, transform_indices = @transform_5, window_bounds = array<i64: 8, 4>}, {pipeline_mode = #tpu.pipeline_mode<synchronous>, transform_indices = @transform_6, window_bounds = array<i64: 8, 1>}, {transform_indices = @transform_7, window_bounds = array<i64: 1, 8, 128>}]} {
    %c0_i32 = arith.constant 0 : i32
    %0 = arith.cmpi eq, %arg1, %c0_i32 : i32
    %1 = arith.extui %0 : i1 to i32
    %c0_i32_0 = arith.constant 0 : i32
    %2 = arith.cmpi ne, %1, %c0_i32_0 : i32
    scf.if %2 {
      %cst_44 = arith.constant 0.000000e+00 : bf16
      %48 = vector.broadcast %cst_44 : bf16 to vector<4x1xbf16>
      %c0_45 = arith.constant 0 : index
      %c0_46 = arith.constant 0 : index
      %49 = vector.load %arg10[%c0_45, %c0_46] : memref<4x129xbf16, #tpu.memory_space<vmem>>, vector<4x1xbf16>
      tpu.vector_store %arg10[%c0_45, %c0_46], %48 {strides = array<i32>} : memref<4x129xbf16, #tpu.memory_space<vmem>>, vector<4x1xbf16>,
      %cst_47 = arith.constant 0.000000e+00 : bf16
      %50 = vector.broadcast %cst_47 : bf16 to vector<8x1xbf16>
      %c0_48 = arith.constant 0 : index
      %c0_49 = arith.constant 0 : index
      %51 = vector.load %arg11[%c0_48, %c0_49] : memref<8x129xbf16, #tpu.memory_space<vmem>>, vector<8x1xbf16>
      tpu.vector_store %arg11[%c0_48, %c0_49], %50 {strides = array<i32>} : memref<8x129xbf16, #tpu.memory_space<vmem>>, vector<8x1xbf16>,
    } else {
    }
    %c0 = arith.constant 0 : index
    %c0_1 = arith.constant 0 : index
    %c0_2 = arith.constant 0 : index
    %3 = vector.load %arg2[%c0, %c0_1, %c0_2] : memref<1x4x128xbf16, #tpu.memory_space<vmem>>, vector<1x4x128xbf16>
    %4 = vector.shape_cast %3 : vector<1x4x128xbf16> to vector<4x128xbf16>
    %c0_3 = arith.constant 0 : index
    %c1 = arith.constant 1 : index
    %5 = vector.load %arg10[%c0_3, %c1] : memref<4x129xbf16, #tpu.memory_space<vmem>>, vector<4x128xbf16>
    tpu.vector_store %arg10[%c0_3, %c1], %4 {strides = array<i32>} : memref<4x129xbf16, #tpu.memory_space<vmem>>, vector<4x128xbf16>,
    %c0_4 = arith.constant 0 : index
    %c0_5 = arith.constant 0 : index
    %6 = vector.load %arg10[%c0_4, %c0_5] : memref<4x129xbf16, #tpu.memory_space<vmem>>, vector<4x128xbf16>
    %c0_6 = arith.constant 0 : index
    %c0_7 = arith.constant 0 : index
    %c0_8 = arith.constant 0 : index
    %7 = vector.load %arg3[%c0_6, %c0_7, %c0_8] : memref<2x8x4xbf16, #tpu.memory_space<vmem>>, vector<1x8x4xbf16>
    %8 = vector.shape_cast %7 : vector<1x8x4xbf16> to vector<8x4xbf16>
    %cst = arith.constant dense<0.000000e+00> : vector<8x128xf32>
    %9 = tpu.matmul %8, %6, %cst {dimension_numbers = #tpu.dot_dimension_numbers<[1], [0], [0], [1], [0, 0, 1, 1], [], []>} : vector<8x4xbf16>, vector<4x128xbf16>, vector<8x128xf32> -> vector<8x128xf32>
    %c0_9 = arith.constant 0 : index
    %c1_10 = arith.constant 1 : index
    %10 = vector.load %arg10[%c0_9, %c1_10] : memref<4x129xbf16, #tpu.memory_space<vmem>>, vector<4x128xbf16>
    %c1_11 = arith.constant 1 : index
    %c0_12 = arith.constant 0 : index
    %c0_13 = arith.constant 0 : index
    %11 = vector.load %arg3[%c1_11, %c0_12, %c0_13] : memref<2x8x4xbf16, #tpu.memory_space<vmem>>, vector<1x8x4xbf16>
    %12 = vector.shape_cast %11 : vector<1x8x4xbf16> to vector<8x4xbf16>
    %cst_14 = arith.constant dense<0.000000e+00> : vector<8x128xf32>
    %13 = tpu.matmul %12, %10, %cst_14 {dimension_numbers = #tpu.dot_dimension_numbers<[1], [0], [0], [1], [0, 0, 1, 1], [], []>} : vector<8x4xbf16>, vector<4x128xbf16>, vector<8x128xf32> -> vector<8x128xf32>
    %14 = arith.addf %9, %13 : vector<8x128xf32>
    %c0_15 = arith.constant 0 : index
    %c0_16 = arith.constant 0 : index
    %15 = vector.load %arg4[%c0_15, %c0_16] : memref<8x1xf32, #tpu.memory_space<vmem>>, vector<8x1xf32>
    %16 = vector.broadcast %15 : vector<8x1xf32> to vector<8x128xf32>
    %17 = arith.addf %14, %16 : vector<8x128xf32>
    %cst_17 = arith.constant 0.000000e+00 : f32
    %18 = vector.broadcast %cst_17 : f32 to vector<8x128xf32>
    %19 = arith.maximumf %17, %18 : vector<8x128xf32>
    %20 = arith.truncf %19 : vector<8x128xf32> to vector<8x128xbf16>
    %c0_18 = arith.constant 0 : index
    %c1_19 = arith.constant 1 : index
    %21 = vector.load %arg11[%c0_18, %c1_19] : memref<8x129xbf16, #tpu.memory_space<vmem>>, vector<8x128xbf16>
    tpu.vector_store %arg11[%c0_18, %c1_19], %20 {strides = array<i32>} : memref<8x129xbf16, #tpu.memory_space<vmem>>, vector<8x128xbf16>,
    %c0_20 = arith.constant 0 : index
    %c0_21 = arith.constant 0 : index
    %22 = vector.load %arg11[%c0_20, %c0_21] : memref<8x129xbf16, #tpu.memory_space<vmem>>, vector<8x128xbf16>
    %c0_22 = arith.constant 0 : index
    %c0_23 = arith.constant 0 : index
    %c0_24 = arith.constant 0 : index
    %23 = vector.load %arg5[%c0_22, %c0_23, %c0_24] : memref<2x8x8xbf16, #tpu.memory_space<vmem>>, vector<1x8x8xbf16>
    %24 = vector.shape_cast %23 : vector<1x8x8xbf16> to vector<8x8xbf16>
    %cst_25 = arith.constant dense<0.000000e+00> : vector<8x128xf32>
    %25 = tpu.matmul %24, %22, %cst_25 {dimension_numbers = #tpu.dot_dimension_numbers<[1], [0], [0], [1], [0, 0, 1, 1], [], []>} : vector<8x8xbf16>, vector<8x128xbf16>, vector<8x128xf32> -> vector<8x128xf32>
    %c0_26 = arith.constant 0 : index
    %c1_27 = arith.constant 1 : index
    %26 = vector.load %arg11[%c0_26, %c1_27] : memref<8x129xbf16, #tpu.memory_space<vmem>>, vector<8x128xbf16>
    %c1_28 = arith.constant 1 : index
    %c0_29 = arith.constant 0 : index
    %c0_30 = arith.constant 0 : index
    %27 = vector.load %arg5[%c1_28, %c0_29, %c0_30] : memref<2x8x8xbf16, #tpu.memory_space<vmem>>, vector<1x8x8xbf16>
    %28 = vector.shape_cast %27 : vector<1x8x8xbf16> to vector<8x8xbf16>
    %cst_31 = arith.constant dense<0.000000e+00> : vector<8x128xf32>
    %29 = tpu.matmul %28, %26, %cst_31 {dimension_numbers = #tpu.dot_dimension_numbers<[1], [0], [0], [1], [0, 0, 1, 1], [], []>} : vector<8x8xbf16>, vector<8x128xbf16>, vector<8x128xf32> -> vector<8x128xf32>
    %30 = arith.addf %25, %29 : vector<8x128xf32>
    %c0_32 = arith.constant 0 : index
    %c0_33 = arith.constant 0 : index
    %31 = vector.load %arg6[%c0_32, %c0_33] : memref<8x1xf32, #tpu.memory_space<vmem>>, vector<8x1xf32>
    %32 = vector.broadcast %31 : vector<8x1xf32> to vector<8x128xf32>
    %33 = arith.addf %30, %32 : vector<8x128xf32>
    %cst_34 = arith.constant 0.000000e+00 : f32
    %34 = vector.broadcast %cst_34 : f32 to vector<8x128xf32>
    %35 = arith.maximumf %33, %34 : vector<8x128xf32>
    %c0_35 = arith.constant 0 : index
    %c0_36 = arith.constant 0 : index
    %36 = vector.load %arg7[%c0_35, %c0_36] : memref<8x4xbf16, #tpu.memory_space<vmem>>, vector<8x4xbf16>
    %cst_37 = arith.constant dense<0.000000e+00> : vector<8x128xf32>
    %37 = tpu.matmul %36, %4, %cst_37 {dimension_numbers = #tpu.dot_dimension_numbers<[1], [0], [0], [1], [0, 0, 1, 1], [], []>} : vector<8x4xbf16>, vector<4x128xbf16>, vector<8x128xf32> -> vector<8x128xf32>
    %c0_38 = arith.constant 0 : index
    %c0_39 = arith.constant 0 : index
    %38 = vector.load %arg8[%c0_38, %c0_39] : memref<8x1xf32, #tpu.memory_space<vmem>>, vector<8x1xf32>
    %39 = vector.broadcast %38 : vector<8x1xf32> to vector<8x128xf32>
    %40 = arith.addf %37, %39 : vector<8x128xf32>
    %41 = arith.addf %35, %40 : vector<8x128xf32>
    %cst_40 = arith.constant 0.000000e+00 : f32
    %42 = vector.broadcast %cst_40 : f32 to vector<8x128xf32>
    %43 = arith.maximumf %41, %42 : vector<8x128xf32>
    %44 = arith.truncf %43 : vector<8x128xf32> to vector<8x128xbf16>
    %c0_41 = arith.constant 0 : index
    %c0_42 = arith.constant 0 : index
    %c0_43 = arith.constant 0 : index
    %45 = vector.load %arg9[%c0_41, %c0_42, %c0_43] : memref<1x8x128xbf16, #tpu.memory_space<vmem>>, vector<1x8x128xbf16>
    %46 = vector.shape_cast %45 : vector<1x8x128xbf16> to vector<8x128xbf16>
    %47 = vector.shape_cast %44 : vector<8x128xbf16> to vector<1x8x128xbf16>
    tpu.vector_store %arg9[%c0_41, %c0_42, %c0_43], %47 {strides = array<i32>} : memref<1x8x128xbf16, #tpu.memory_space<vmem>>, vector<1x8x128xbf16>,
    return
  }
  func.func @transform_0(%arg0: i32, %arg1: i32) -> (i32, i32, i32) {
    %c0_i32 = arith.constant 0 : i32
    %c0_i32_0 = arith.constant 0 : i32
    return %arg0, %c0_i32, %arg1 : i32, i32, i32
  }
  func.func @transform_1(%arg0: i32, %arg1: i32) -> (i32, i32, i32) {
    %c0_i32 = arith.constant 0 : i32
    %c0_i32_0 = arith.constant 0 : i32
    %c0_i32_1 = arith.constant 0 : i32
    %c0_i32_2 = arith.constant 0 : i32
    return %c0_i32, %c0_i32_0, %c0_i32_1 : i32, i32, i32
  }
  func.func @transform_2(%arg0: i32, %arg1: i32) -> (i32, i32) {
    %c0_i32 = arith.constant 0 : i32
    %c0_i32_0 = arith.constant 0 : i32
    %c0_i32_1 = arith.constant 0 : i32
    return %c0_i32, %c0_i32_0 : i32, i32
  }
  func.func @transform_3(%arg0: i32, %arg1: i32) -> (i32, i32, i32) {
    %c0_i32 = arith.constant 0 : i32
    %c0_i32_0 = arith.constant 0 : i32
    %c0_i32_1 = arith.constant 0 : i32
    %c0_i32_2 = arith.constant 0 : i32
    return %c0_i32, %c0_i32_0, %c0_i32_1 : i32, i32, i32
  }
  func.func @transform_4(%arg0: i32, %arg1: i32) -> (i32, i32) {
    %c0_i32 = arith.constant 0 : i32
    %c0_i32_0 = arith.constant 0 : i32
    %c0_i32_1 = arith.constant 0 : i32
    return %c0_i32, %c0_i32_0 : i32, i32
  }
  func.func @transform_5(%arg0: i32, %arg1: i32) -> (i32, i32) {
    %c0_i32 = arith.constant 0 : i32
    %c0_i32_0 = arith.constant 0 : i32
    %c0_i32_1 = arith.constant 0 : i32
    return %c0_i32, %c0_i32_0 : i32, i32
  }
  func.func @transform_6(%arg0: i32, %arg1: i32) -> (i32, i32) {
    %c0_i32 = arith.constant 0 : i32
    %c0_i32_0 = arith.constant 0 : i32
    %c0_i32_1 = arith.constant 0 : i32
    return %c0_i32, %c0_i32_0 : i32, i32
  }
  func.func @transform_7(%arg0: i32, %arg1: i32) -> (i32, i32, i32) {
    %c0_i32 = arith.constant 0 : i32
    %c0_i32_0 = arith.constant 0 : i32
    return %arg0, %c0_i32, %arg1 : i32, i32, i32
  }
}

module attributes {stable_mosaic.version = 11 : i64} {
  func.func @_temporal_block_kernel(%arg0: i32, %arg1: i32, %arg2: memref<1x8x128xbf16, #tpu.memory_space<vmem>>, %arg3: memref<2x8x8xbf16, #tpu.memory_space<vmem>>, %arg4: memref<8x1xf32, #tpu.memory_space<vmem>>, %arg5: memref<2x8x8xbf16, #tpu.memory_space<vmem>>, %arg6: memref<8x1xf32, #tpu.memory_space<vmem>>, %arg7: memref<1x8x128xbf16, #tpu.memory_space<vmem>>, %arg8: memref<8x130xbf16, #tpu.memory_space<vmem>>, %arg9: memref<8x130xbf16, #tpu.memory_space<vmem>>) attributes {dimension_semantics = [#tpu.dimension_semantics<parallel>, #tpu.dimension_semantics<arbitrary>], iteration_bounds = array<i64: 2, 1>, scalar_prefetch = 0 : i64, scratch_operands = 2 : i64, tpu.core_type = #tpu.core_type<tc>, window_params = [{transform_indices = @transform_0, window_bounds = array<i64: 1, 8, 128>}, {pipeline_mode = #tpu.pipeline_mode<synchronous>, transform_indices = @transform_1, window_bounds = array<i64: 2, 8, 8>}, {pipeline_mode = #tpu.pipeline_mode<synchronous>, transform_indices = @transform_2, window_bounds = array<i64: 8, 1>}, {pipeline_mode = #tpu.pipeline_mode<synchronous>, transform_indices = @transform_3, window_bounds = array<i64: 2, 8, 8>}, {pipeline_mode = #tpu.pipeline_mode<synchronous>, transform_indices = @transform_4, window_bounds = array<i64: 8, 1>}, {transform_indices = @transform_5, window_bounds = array<i64: 1, 8, 128>}]} {
    %c0_i32 = arith.constant 0 : i32
    %0 = arith.cmpi eq, %arg1, %c0_i32 : i32
    %1 = arith.extui %0 : i1 to i32
    %c0_i32_0 = arith.constant 0 : i32
    %2 = arith.cmpi ne, %1, %c0_i32_0 : i32
    scf.if %2 {
      %cst_38 = arith.constant 0.000000e+00 : bf16
      %44 = vector.broadcast %cst_38 : bf16 to vector<8x2xbf16>
      %c0_39 = arith.constant 0 : index
      %c0_40 = arith.constant 0 : index
      %45 = vector.load %arg8[%c0_39, %c0_40] : memref<8x130xbf16, #tpu.memory_space<vmem>>, vector<8x2xbf16>
      tpu.vector_store %arg8[%c0_39, %c0_40], %44 {strides = array<i32>} : memref<8x130xbf16, #tpu.memory_space<vmem>>, vector<8x2xbf16>,
      %cst_41 = arith.constant 0.000000e+00 : bf16
      %46 = vector.broadcast %cst_41 : bf16 to vector<8x2xbf16>
      %c0_42 = arith.constant 0 : index
      %c0_43 = arith.constant 0 : index
      %47 = vector.load %arg9[%c0_42, %c0_43] : memref<8x130xbf16, #tpu.memory_space<vmem>>, vector<8x2xbf16>
      tpu.vector_store %arg9[%c0_42, %c0_43], %46 {strides = array<i32>} : memref<8x130xbf16, #tpu.memory_space<vmem>>, vector<8x2xbf16>,
    } else {
    }
    %c0 = arith.constant 0 : index
    %c0_1 = arith.constant 0 : index
    %c0_2 = arith.constant 0 : index
    %3 = vector.load %arg2[%c0, %c0_1, %c0_2] : memref<1x8x128xbf16, #tpu.memory_space<vmem>>, vector<1x8x128xbf16>
    %4 = vector.shape_cast %3 : vector<1x8x128xbf16> to vector<8x128xbf16>
    %c0_3 = arith.constant 0 : index
    %c2 = arith.constant 2 : index
    %5 = vector.load %arg8[%c0_3, %c2] : memref<8x130xbf16, #tpu.memory_space<vmem>>, vector<8x128xbf16>
    tpu.vector_store %arg8[%c0_3, %c2], %4 {strides = array<i32>} : memref<8x130xbf16, #tpu.memory_space<vmem>>, vector<8x128xbf16>,
    %c0_4 = arith.constant 0 : index
    %c0_5 = arith.constant 0 : index
    %6 = vector.load %arg8[%c0_4, %c0_5] : memref<8x130xbf16, #tpu.memory_space<vmem>>, vector<8x128xbf16>
    %c0_6 = arith.constant 0 : index
    %c0_7 = arith.constant 0 : index
    %c0_8 = arith.constant 0 : index
    %7 = vector.load %arg3[%c0_6, %c0_7, %c0_8] : memref<2x8x8xbf16, #tpu.memory_space<vmem>>, vector<1x8x8xbf16>
    %8 = vector.shape_cast %7 : vector<1x8x8xbf16> to vector<8x8xbf16>
    %cst = arith.constant dense<0.000000e+00> : vector<8x128xf32>
    %9 = tpu.matmul %8, %6, %cst {dimension_numbers = #tpu.dot_dimension_numbers<[1], [0], [0], [1], [0, 0, 1, 1], [], []>} : vector<8x8xbf16>, vector<8x128xbf16>, vector<8x128xf32> -> vector<8x128xf32>
    %c0_9 = arith.constant 0 : index
    %c2_10 = arith.constant 2 : index
    %10 = vector.load %arg8[%c0_9, %c2_10] : memref<8x130xbf16, #tpu.memory_space<vmem>>, vector<8x128xbf16>
    %c1 = arith.constant 1 : index
    %c0_11 = arith.constant 0 : index
    %c0_12 = arith.constant 0 : index
    %11 = vector.load %arg3[%c1, %c0_11, %c0_12] : memref<2x8x8xbf16, #tpu.memory_space<vmem>>, vector<1x8x8xbf16>
    %12 = vector.shape_cast %11 : vector<1x8x8xbf16> to vector<8x8xbf16>
    %cst_13 = arith.constant dense<0.000000e+00> : vector<8x128xf32>
    %13 = tpu.matmul %12, %10, %cst_13 {dimension_numbers = #tpu.dot_dimension_numbers<[1], [0], [0], [1], [0, 0, 1, 1], [], []>} : vector<8x8xbf16>, vector<8x128xbf16>, vector<8x128xf32> -> vector<8x128xf32>
    %14 = arith.addf %9, %13 : vector<8x128xf32>
    %c0_14 = arith.constant 0 : index
    %c0_15 = arith.constant 0 : index
    %15 = vector.load %arg4[%c0_14, %c0_15] : memref<8x1xf32, #tpu.memory_space<vmem>>, vector<8x1xf32>
    %16 = vector.broadcast %15 : vector<8x1xf32> to vector<8x128xf32>
    %17 = arith.addf %14, %16 : vector<8x128xf32>
    %cst_16 = arith.constant 0.000000e+00 : f32
    %18 = vector.broadcast %cst_16 : f32 to vector<8x128xf32>
    %19 = arith.maximumf %17, %18 : vector<8x128xf32>
    %20 = arith.truncf %19 : vector<8x128xf32> to vector<8x128xbf16>
    %c0_17 = arith.constant 0 : index
    %c2_18 = arith.constant 2 : index
    %21 = vector.load %arg9[%c0_17, %c2_18] : memref<8x130xbf16, #tpu.memory_space<vmem>>, vector<8x128xbf16>
    tpu.vector_store %arg9[%c0_17, %c2_18], %20 {strides = array<i32>} : memref<8x130xbf16, #tpu.memory_space<vmem>>, vector<8x128xbf16>,
    %c0_19 = arith.constant 0 : index
    %c0_20 = arith.constant 0 : index
    %22 = vector.load %arg9[%c0_19, %c0_20] : memref<8x130xbf16, #tpu.memory_space<vmem>>, vector<8x128xbf16>
    %c0_21 = arith.constant 0 : index
    %c0_22 = arith.constant 0 : index
    %c0_23 = arith.constant 0 : index
    %23 = vector.load %arg5[%c0_21, %c0_22, %c0_23] : memref<2x8x8xbf16, #tpu.memory_space<vmem>>, vector<1x8x8xbf16>
    %24 = vector.shape_cast %23 : vector<1x8x8xbf16> to vector<8x8xbf16>
    %cst_24 = arith.constant dense<0.000000e+00> : vector<8x128xf32>
    %25 = tpu.matmul %24, %22, %cst_24 {dimension_numbers = #tpu.dot_dimension_numbers<[1], [0], [0], [1], [0, 0, 1, 1], [], []>} : vector<8x8xbf16>, vector<8x128xbf16>, vector<8x128xf32> -> vector<8x128xf32>
    %c0_25 = arith.constant 0 : index
    %c2_26 = arith.constant 2 : index
    %26 = vector.load %arg9[%c0_25, %c2_26] : memref<8x130xbf16, #tpu.memory_space<vmem>>, vector<8x128xbf16>
    %c1_27 = arith.constant 1 : index
    %c0_28 = arith.constant 0 : index
    %c0_29 = arith.constant 0 : index
    %27 = vector.load %arg5[%c1_27, %c0_28, %c0_29] : memref<2x8x8xbf16, #tpu.memory_space<vmem>>, vector<1x8x8xbf16>
    %28 = vector.shape_cast %27 : vector<1x8x8xbf16> to vector<8x8xbf16>
    %cst_30 = arith.constant dense<0.000000e+00> : vector<8x128xf32>
    %29 = tpu.matmul %28, %26, %cst_30 {dimension_numbers = #tpu.dot_dimension_numbers<[1], [0], [0], [1], [0, 0, 1, 1], [], []>} : vector<8x8xbf16>, vector<8x128xbf16>, vector<8x128xf32> -> vector<8x128xf32>
    %30 = arith.addf %25, %29 : vector<8x128xf32>
    %c0_31 = arith.constant 0 : index
    %c0_32 = arith.constant 0 : index
    %31 = vector.load %arg6[%c0_31, %c0_32] : memref<8x1xf32, #tpu.memory_space<vmem>>, vector<8x1xf32>
    %32 = vector.broadcast %31 : vector<8x1xf32> to vector<8x128xf32>
    %33 = arith.addf %30, %32 : vector<8x128xf32>
    %cst_33 = arith.constant 0.000000e+00 : f32
    %34 = vector.broadcast %cst_33 : f32 to vector<8x128xf32>
    %35 = arith.maximumf %33, %34 : vector<8x128xf32>
    %36 = arith.extf %4 : vector<8x128xbf16> to vector<8x128xf32>
    %37 = arith.addf %35, %36 : vector<8x128xf32>
    %cst_34 = arith.constant 0.000000e+00 : f32
    %38 = vector.broadcast %cst_34 : f32 to vector<8x128xf32>
    %39 = arith.maximumf %37, %38 : vector<8x128xf32>
    %40 = arith.truncf %39 : vector<8x128xf32> to vector<8x128xbf16>
    %c0_35 = arith.constant 0 : index
    %c0_36 = arith.constant 0 : index
    %c0_37 = arith.constant 0 : index
    %41 = vector.load %arg7[%c0_35, %c0_36, %c0_37] : memref<1x8x128xbf16, #tpu.memory_space<vmem>>, vector<1x8x128xbf16>
    %42 = vector.shape_cast %41 : vector<1x8x128xbf16> to vector<8x128xbf16>
    %43 = vector.shape_cast %40 : vector<8x128xbf16> to vector<1x8x128xbf16>
    tpu.vector_store %arg7[%c0_35, %c0_36, %c0_37], %43 {strides = array<i32>} : memref<1x8x128xbf16, #tpu.memory_space<vmem>>, vector<1x8x128xbf16>,
    return
  }
  func.func @transform_0(%arg0: i32, %arg1: i32) -> (i32, i32, i32) {
    %c0_i32 = arith.constant 0 : i32
    %c0_i32_0 = arith.constant 0 : i32
    return %arg0, %c0_i32, %arg1 : i32, i32, i32
  }
  func.func @transform_1(%arg0: i32, %arg1: i32) -> (i32, i32, i32) {
    %c0_i32 = arith.constant 0 : i32
    %c0_i32_0 = arith.constant 0 : i32
    %c0_i32_1 = arith.constant 0 : i32
    %c0_i32_2 = arith.constant 0 : i32
    return %c0_i32, %c0_i32_0, %c0_i32_1 : i32, i32, i32
  }
  func.func @transform_2(%arg0: i32, %arg1: i32) -> (i32, i32) {
    %c0_i32 = arith.constant 0 : i32
    %c0_i32_0 = arith.constant 0 : i32
    %c0_i32_1 = arith.constant 0 : i32
    return %c0_i32, %c0_i32_0 : i32, i32
  }
  func.func @transform_3(%arg0: i32, %arg1: i32) -> (i32, i32, i32) {
    %c0_i32 = arith.constant 0 : i32
    %c0_i32_0 = arith.constant 0 : i32
    %c0_i32_1 = arith.constant 0 : i32
    %c0_i32_2 = arith.constant 0 : i32
    return %c0_i32, %c0_i32_0, %c0_i32_1 : i32, i32, i32
  }
  func.func @transform_4(%arg0: i32, %arg1: i32) -> (i32, i32) {
    %c0_i32 = arith.constant 0 : i32
    %c0_i32_0 = arith.constant 0 : i32
    %c0_i32_1 = arith.constant 0 : i32
    return %c0_i32, %c0_i32_0 : i32, i32
  }
  func.func @transform_5(%arg0: i32, %arg1: i32) -> (i32, i32, i32) {
    %c0_i32 = arith.constant 0 : i32
    %c0_i32_0 = arith.constant 0 : i32
    return %arg0, %c0_i32, %arg1 : i32, i32, i32
  }
}

</mosaic_0001>

<llo_original>
// kernel: tcn_forward.2
$region0: #{tcn_forward.2}
  #allocation0 [shape = 'u32[]', space=smem, size = 0x4, offset = 0x4, fixed_abs, tag = 'smem constant byte address 0x4 - core index']
  #allocation1 [shape = 'u32[144,128]{1,0:T(1,128)}', space=vmem, size = 0x12000, scoped, tag = 'internal scratch']
  #allocation2 [shape = 'bf16[4,129]{1,0:T(4,128)(2,1)}', space=vmem, size = 0x800, scoped, tag = 'scratch operand']
  #allocation3 [shape = 'bf16[8,129]{1,0:T(8,128)(2,1)}', space=vmem, size = 0x1000, scoped, tag = 'scratch operand']
  %s0 = inlined_call_operand.vmem [shape: bf16[2,4,128], index: 0, kind: input, shape index: {}]
  %s1 = inlined_call_operand.vmem [shape: bf16[2,8,4], index: 1, kind: input, shape index: {}]
  %s2 = inlined_call_operand.vmem [shape: f32[8,1], index: 2, kind: input, shape index: {}]
  %s3 = inlined_call_operand.vmem [shape: bf16[2,8,8], index: 3, kind: input, shape index: {}]
  %s4 = inlined_call_operand.vmem [shape: f32[8,1], index: 4, kind: input, shape index: {}]
  %s5 = inlined_call_operand.vmem [shape: bf16[8,4], index: 5, kind: input, shape index: {}]
  %s6 = inlined_call_operand.vmem [shape: f32[8,1], index: 6, kind: input, shape index: {}]
  %s7 = inlined_call_operand.vmem [shape: bf16[2,8,128], index: 7, kind: output, shape index: {}]
  %s8 = sld [smem:[#allocation0]]
  $region65: #{tcn_forward.2} parent=0
    _
  %s10 = ssub.s32 1, %s8
  %s11 = scalar_select 0, %s10, %s8
  loop: start=0, step=1, limit=4
  $region2: #{tcn_forward.2} parent=0 // loop_pre_header
    _
  $region3: #{tcn_forward.2} parent=0 // loop_header
    %s13 = sphi 0, %s17
    %p14 = scmp.ge.s32.totalorder %s13, 4
    %s20 = sphi 0, %s32
    %s21 = sphi 0, %s28
    %s22 = sphi 0, %s20
    %s23 = sphi 0, %s21
    %s24 = sphi 0, %s22
    %s25 = sphi 0, %s23
    %s37 = sphi 0, %s39
    %s40 = sphi 0, %s37
    %s41 = sphi 0, %s40
    %s57 = sphi 0, %s41
    %s61 = sphi 0, %s61
    %s63 = sphi 0, %s61
    %s64 = sphi 0, %s63
    %s78 = sphi 0, %s64
    %s82 = sphi 0, %s82
    %s84 = sphi 0, %s82
    %s85 = sphi 0, %s84
    %s99 = sphi 0, %s85
    %s103 = sphi 0, %s103
    %s105 = sphi 0, %s103
    %s106 = sphi 0, %s105
    %s120 = sphi 0, %s106
    %s124 = sphi 0, %s124
    %s126 = sphi 0, %s124
    %s127 = sphi 0, %s126
    %s141 = sphi 0, %s127
    %s145 = sphi 0, %s145
    %s147 = sphi 0, %s145
    %s148 = sphi 0, %s147
    %s162 = sphi 0, %s148
    %s166 = sphi 0, %s166
    %s168 = sphi 0, %s166
    %s169 = sphi 0, %s168
    %s183 = sphi 0, %s169
    %s191 = sphi 0, %s193
    %s194 = sphi 0, %s191
    %s195 = sphi 0, %s194
    %s211 = sphi 0, %s195
  $region4: #{tcn_forward.2} parent=0 // loop_header_branch
    %16 = sbr.rel (%p14) target = $region8
  $region5: #{tcn_forward.2} parent=0 // loop_body
    %s18 = ssub.s32 %s13, 1
    %s19 = ssub.s32 %s13, 2
    %s26 = sadd.s32 1, %s21
    %p27 = scmp.ge.s32.totalorder %s26, 1
    %s28 = scalar_select %p27, 0, %s26
    %s29 = sadd.s32 1, %s20
    %s30 = scalar_select %p27, %s29, %s20
    %p31 = scmp.ge.s32.totalorder %s30, 2
    %s32 = scalar_select %p31, 0, %s30
    %s33 = ssub.s32 %s20, %s32
    %s34 = ssub.s32 %s21, %s28
    %s35 = sor.u32 %s33, %s34
    %p36 = scmp.eq.s32.totalorder %s35, 0
    %s38 = sadd.s32 %s37, 1
    %s39 = scalar_select %p36, %s37, %s38
    %p42 = pneg %p36
    %p43 = scmp.eq.s32.totalorder %s13, 1
    %p44 = por %p42, %p43
    %p45 = scmp.ne.s32.totalorder %s37, %s40
    %p46 = scmp.eq.s32.totalorder %s13, 0
    %p47 = por %p45, %p46
    %p48 = scmp.ne.s32.totalorder %s37, %s40
    %p49 = scmp.eq.s32.totalorder %s18, 1
    %p50 = por %p48, %p49
    %p51 = scmp.ne.s32.totalorder %s40, %s41
    %p52 = scmp.eq.s32.totalorder %s18, 0
    %p53 = por %p51, %p52
    %p54 = scmp.ne.s32.totalorder %s40, %s41
    %p55 = scmp.eq.s32.totalorder %s19, 1
    %p56 = por %p54, %p55
    %p58 = scmp.ne.s32.totalorder %s41, %s57
    %p59 = scmp.eq.s32.totalorder %s19, 0
    %p60 = por %p58, %p59
    %s62 = sadd.s32 %s61, 1
    %p65 = scmp.eq.s32.totalorder %s13, 1
    %p66 = scmp.ne.s32.totalorder %s61, %s63
    %p67 = scmp.eq.s32.totalorder %s13, 0
    %p68 = por %p66, %p67
    %p69 = scmp.ne.s32.totalorder %s61, %s63
    %p70 = scmp.eq.s32.totalorder %s18, 1
    %p71 = por %p69, %p70
    %p72 = scmp.ne.s32.totalorder %s63, %s64
    %p73 = scmp.eq.s32.totalorder %s18, 0
    %p74 = por %p72, %p73
    %p75 = scmp.ne.s32.totalorder %s63, %s64
    %p76 = scmp.eq.s32.totalorder %s19, 1
    %p77 = por %p75, %p76
    %p79 = scmp.ne.s32.totalorder %s64, %s78
    %p80 = scmp.eq.s32.totalorder %s19, 0
    %p81 = por %p79, %p80
    %s83 = sadd.s32 %s82, 1
    %p86 = scmp.eq.s32.totalorder %s13, 1
    %p87 = scmp.ne.s32.totalorder %s82, %s84
    %p88 = scmp.eq.s32.totalorder %s13, 0
    %p89 = por %p87, %p88
    %p90 = scmp.ne.s32.totalorder %s82, %s84
    %p91 = scmp.eq.s32.totalorder %s18, 1
    %p92 = por %p90, %p91
    %p93 = scmp.ne.s32.totalorder %s84, %s85
    %p94 = scmp.eq.s32.totalorder %s18, 0
    %p95 = por %p93, %p94
    %p96 = scmp.ne.s32.totalorder %s84, %s85
    %p97 = scmp.eq.s32.totalorder %s19, 1
    %p98 = por %p96, %p97
    %p100 = scmp.ne.s32.totalorder %s85, %s99
    %p101 = scmp.eq.s32.totalorder %s19, 0
    %p102 = por %p100, %p101
    %s104 = sadd.s32 %s103, 1
    %p107 = scmp.eq.s32.totalorder %s13, 1
    %p108 = scmp.ne.s32.totalorder %s103, %s105
    %p109 = scmp.eq.s32.totalorder %s13, 0
    %p110 = por %p108, %p109
    %p111 = scmp.ne.s32.totalorder %s103, %s105
    %p112 = scmp.eq.s32.totalorder %s18, 1
    %p113 = por %p111, %p112
    %p114 = scmp.ne.s32.totalorder %s105, %s106
    %p115 = scmp.eq.s32.totalorder %s18, 0
    %p116 = por %p114, %p115
    %p117 = scmp.ne.s32.totalorder %s105, %s106
    %p118 = scmp.eq.s32.totalorder %s19, 1
    %p119 = por %p117, %p118
    %p121 = scmp.ne.s32.totalorder %s106, %s120
    %p122 = scmp.eq.s32.totalorder %s19, 0
    %p123 = por %p121, %p122
    %s125 = sadd.s32 %s124, 1
    %p128 = scmp.eq.s32.totalorder %s13, 1
    %p129 = scmp.ne.s32.totalorder %s124, %s126
    %p130 = scmp.eq.s32.totalorder %s13, 0
    %p131 = por %p129, %p130
    %p132 = scmp.ne.s32.totalorder %s124, %s126
    %p133 = scmp.eq.s32.totalorder %s18, 1
    %p134 = por %p132, %p133
    %p135 = scmp.ne.s32.totalorder %s126, %s127
    %p136 = scmp.eq.s32.totalorder %s18, 0
    %p137 = por %p135, %p136
    %p138 = scmp.ne.s32.totalorder %s126, %s127
    %p139 = scmp.eq.s32.totalorder %s19, 1
    %p140 = por %p138, %p139
    %p142 = scmp.ne.s32.totalorder %s127, %s141
    %p143 = scmp.eq.s32.totalorder %s19, 0
    %p144 = por %p142, %p143
    %s146 = sadd.s32 %s145, 1
    %p149 = scmp.eq.s32.totalorder %s13, 1
    %p150 = scmp.ne.s32.totalorder %s145, %s147
    %p151 = scmp.eq.s32.totalorder %s13, 0
    %p152 = por %p150, %p151
    %p153 = scmp.ne.s32.totalorder %s145, %s147
    %p154 = scmp.eq.s32.totalorder %s18, 1
    %p155 = por %p153, %p154
    %p156 = scmp.ne.s32.totalorder %s147, %s148
    %p157 = scmp.eq.s32.totalorder %s18, 0
    %p158 = por %p156, %p157
    %p159 = scmp.ne.s32.totalorder %s147, %s148
    %p160 = scmp.eq.s32.totalorder %s19, 1
    %p161 = por %p159, %p160
    %p163 = scmp.ne.s32.totalorder %s148, %s162
    %p164 = scmp.eq.s32.totalorder %s19, 0
    %p165 = por %p163, %p164
    %s167 = sadd.s32 %s166, 1
    %p170 = scmp.eq.s32.totalorder %s13, 1
    %p171 = scmp.ne.s32.totalorder %s166, %s168
    %p172 = scmp.eq.s32.totalorder %s13, 0
    %p173 = por %p171, %p172
    %p174 = scmp.ne.s32.totalorder %s166, %s168
    %p175 = scmp.eq.s32.totalorder %s18, 1
    %p176 = por %p174, %p175
    %p177 = scmp.ne.s32.totalorder %s168, %s169
    %p178 = scmp.eq.s32.totalorder %s18, 0
    %p179 = por %p177, %p178
    %p180 = scmp.ne.s32.totalorder %s168, %s169
    %p181 = scmp.eq.s32.totalorder %s19, 1
    %p182 = por %p180, %p181
    %p184 = scmp.ne.s32.totalorder %s169, %s183
    %p185 = scmp.eq.s32.totalorder %s19, 0
    %p186 = por %p184, %p185
    %s187 = ssub.s32 %s20, %s32
    %s188 = ssub.s32 %s21, %s28
    %s189 = sor.u32 %s187, %s188
    %p190 = scmp.eq.s32.totalorder %s189, 0
    %s192 = sadd.s32 %s191, 1
    %s193 = scalar_select %p190, %s191, %s192
    %p196 = pneg %p190
    %p197 = scmp.eq.s32.totalorder %s13, 1
    %p198 = por %p196, %p197
    %p199 = scmp.ne.s32.totalorder %s191, %s194
    %p200 = scmp.eq.s32.totalorder %s13, 0
    %p201 = por %p199, %p200
    %p202 = scmp.ne.s32.totalorder %s191, %s194
    %p203 = scmp.eq.s32.totalorder %s18, 1
    %p204 = por %p202, %p203
    %p205 = scmp.ne.s32.totalorder %s194, %s195
    %p206 = scmp.eq.s32.totalorder %s18, 0
    %p207 = por %p205, %p206
    %p208 = scmp.ne.s32.totalorder %s194, %s195
    %p209 = scmp.eq.s32.totalorder %s19, 1
    %p210 = por %p208, %p209
    %p212 = scmp.ne.s32.totalorder %s195, %s211
    %p213 = scmp.eq.s32.totalorder %s19, 0
    %p214 = por %p212, %p213
    %p215 = scmp.le.s32.totalorder 1, %s13
    %p216 = scmp.lt.s32.totalorder %s13, 3
    %p217 = pnand %p215, %p216
    %p218 = pneg %p217
    // Predicated region
    $region9: #{tcn_forward.2} parent=5 // pred_check
      _
    $region10: #{tcn_forward.2} parent=5 // pred_check_branch
      %220 = sbr.rel (%p217) target = $region12
    $region11: #{tcn_forward.2} parent=5 // pred_region
      %s221 = ssub.s32 %s13, 1
      // Predicated region
      $region13: #{tcn_forward.2} parent=11 // pred_check
        %p222 = pneg %p74
      $region14: #{tcn_forward.2} parent=11 // pred_check_branch
        %224 = sbr.rel (%p222) target = $region16
      $region15: #{tcn_forward.2} parent=11 // pred_region
        _
      $region16: #{tcn_forward.2} parent=11 // pred_fallthru
        _
      // Predicated region
      $region17: #{tcn_forward.2} parent=11 // pred_check
        %p225 = pneg %p95
      $region18: #{tcn_forward.2} parent=11 // pred_check_branch
        %227 = sbr.rel (%p225) target = $region20
      $region19: #{tcn_forward.2} parent=11 // pred_region
        _
      $region20: #{tcn_forward.2} parent=11 // pred_fallthru
        _
      // Predicated region
      $region21: #{tcn_forward.2} parent=11 // pred_check
        %p228 = pneg %p116
      $region22: #{tcn_forward.2} parent=11 // pred_check_branch
        %230 = sbr.rel (%p228) target = $region24
      $region23: #{tcn_forward.2} parent=11 // pred_region
        _
      $region24: #{tcn_forward.2} parent=11 // pred_fallthru
        _
      // Predicated region
      $region25: #{tcn_forward.2} parent=11 // pred_check
        %p231 = pneg %p137
      $region26: #{tcn_forward.2} parent=11 // pred_check_branch
        %233 = sbr.rel (%p231) target = $region28
      $region27: #{tcn_forward.2} parent=11 // pred_region
        _
      $region28: #{tcn_forward.2} parent=11 // pred_fallthru
        _
      // Predicated region
      $region29: #{tcn_forward.2} parent=11 // pred_check
        %p234 = pneg %p158
      $region30: #{tcn_forward.2} parent=11 // pred_check_branch
        %236 = sbr.rel (%p234) target = $region32
      $region31: #{tcn_forward.2} parent=11 // pred_region
        _
      $region32: #{tcn_forward.2} parent=11 // pred_fallthru
        _
      // Predicated region
      $region33: #{tcn_forward.2} parent=11 // pred_check
        %p237 = pneg %p179
      $region34: #{tcn_forward.2} parent=11 // pred_check_branch
        %239 = sbr.rel (%p237) target = $region36
      $region35: #{tcn_forward.2} parent=11 // pred_region
        _
      $region36: #{tcn_forward.2} parent=11 // pred_fallthru
        _
    $region12: #{tcn_forward.2} parent=5 // pred_fallthru
      _
    %p240 = scmp.lt.s32.totalorder %s13, 2
    // Predicated region
    $region37: #{tcn_forward.2} parent=5 // pred_check
      %p241 = pneg %p240
    $region38: #{tcn_forward.2} parent=5 // pred_check_branch
      %243 = sbr.rel (%p241) target = $region40
    $region39: #{tcn_forward.2} parent=5 // pred_region
      // Predicated region
      $region41: #{tcn_forward.2} parent=39 // pred_check
        %p244 = pneg %p47
      $region42: #{tcn_forward.2} parent=39 // pred_check_branch
        %246 = sbr.rel (%p244) target = $region44
      $region43: #{tcn_forward.2} parent=39 // pred_region
        %p247 = scmp.lt.s32.totalorder %s20, 1
        %s248 = scalar_select %p247, %s20, 1
        %p249 = scmp.lt.s32.totalorder %s21, 0
        %s250 = scalar_select %p249, %s21, 0
        %s251 = sadd.s32 %s250, %s248
        %s252 = smul.addr %s251, 2
        %s253 = scalar_lea.vmem %s0, %s252
      $region44: #{tcn_forward.2} parent=39 // pred_fallthru
        _
    $region40: #{tcn_forward.2} parent=5 // pred_fallthru
      _
    %p254 = scmp.le.s32.totalorder 1, %s13
    %p255 = scmp.lt.s32.totalorder %s13, 3
    %p256 = pnand %p254, %p255
    %p257 = pneg %p256
    // Predicated region
    $region45: #{tcn_forward.2} parent=5 // pred_check
      _
    $region46: #{tcn_forward.2} parent=5 // pred_check_branch
      %259 = sbr.rel (%p256) target = $region48
    $region47: #{tcn_forward.2} parent=5 // pred_region
      %s260 = ssub.s32 %s13, 1
      %p261 = scmp.lt.s32.totalorder %s22, 1
      %s262 = scalar_select %p261, %s22, 1
      %p263 = scmp.lt.s32.totalorder %s23, 0
      %s264 = scalar_select %p263, %s23, 0
      %s265 = sadd.s32 %s264, %s262
      %s266 = smul.addr %s265, 2
      %s267 = scalar_lea.vmem %s0, %s266
      %p268 = pneg %p53
      %p269 = pneg %p50
      %p270 = pneg %p74
      %p271 = pneg %p71
      %p272 = pneg %p95
      %p273 = pneg %p92
      %p274 = pneg %p116
      %p275 = pneg %p113
      %p276 = pneg %p137
      %p277 = pneg %p134
      %p278 = pneg %p158
      %p279 = pneg %p155
      %p280 = pneg %p179
      %p281 = pneg %p176
      %p282 = pneg %p207
      %p283 = pneg %p204
      %p284 = scmp.lt.s32.totalorder %s22, 1
      %s285 = scalar_select %p284, %s22, 1
      %p286 = scmp.lt.s32.totalorder %s23, 0
      %s287 = scalar_select %p286, %s23, 0
      %s288 = sadd.s32 %s287, %s285
      %s289 = smul.addr %s288, 4
      %s290 = scalar_lea.vmem %s7, %s289
      %p291 = scmp.lt.s32.totalorder %s22, 1
      %s292 = scalar_select %p291, %s22, 1
      %p293 = scmp.lt.s32.totalorder %s23, 0
      %s294 = scalar_select %p293, %s23, 0
      %s295 = sadd.s32 %s294, %s292
      %s296 = smul.addr %s295, 2
      %s297 = scalar_lea.vmem %s0, %s296
      %p298 = scmp.lt.s32.totalorder %s22, 1
      %s299 = scalar_select %p298, %s22, 1
      %p300 = scmp.lt.s32.totalorder %s23, 0
      %s301 = scalar_select %p300, %s23, 0
      %s302 = sadd.s32 %s301, %s299
      %s303 = smul.addr %s302, 4
      %s304 = scalar_lea.vmem %s7, %s303
      %p306 = scmp.eq.s32.totalorder %s23, 0
      // Predicated region
      $region49: #{tcn_forward.2} parent=47 // pred_check
        %p307 = pneg %p306
      $region50: #{tcn_forward.2} parent=47 // pred_check_branch
        %309 = sbr.rel (%p307) target = $region52
      $region51: #{tcn_forward.2} parent=47 // pred_region
        %vm310 = vcmask 1024
        %311 = vst.msk [vmem:[#allocation2] sm:$0x3] %vm310, 0
        %vm312 = vcmask 3072
        %313 = vst.msk [vmem:[#allocation3] sm:$0xf] %vm312, 0
      $region52: #{tcn_forward.2} parent=47 // pred_fallthru
        _
      %v314 = vld [vmem:[%s297] sm:$0x3]
      %316 = vrot.lane.b32.xlu0 %v314, 1
      %v317 = vpop.permute.xlu0 %316
      %v318 = vrot.slane %v317, 6
      %vm319 = vcmask 7168
      %v320 = vsel %vm319, %v318, %v317
      %vm322 = vcmask 1041416
      %vm323 = vcmask 3074
      %vm324 = vmor %vm323, %vm322
      %325 = vst.msk [vmem:[#allocation2] sm:$0xf] %vm324, %v320
      %v326 = vld [vmem:[#allocation2] sm:$0x3]
      %v327 = vld [vmem:[%s1] sm:$0xf]
      %v328 = vld [vmem:[#allocation2] sm:$0xf]
      %s329 = scalar_lea.vmem %s1, 4
      %v330 = vld [vmem:[%s329] sm:$0xf]
      %v333 = vunpack.c.l.s4 1983009808
      %v334 = vunpack.c.0.s8 %v333
      %v335 = vlaneseq
      %v336 = vshrl.u32 %v335, 7
      %v337 = vsub.s32 %v334, %v336
      %v338 = vrot.slane %v328, %v337
      %v339 = vcombine.high %v338, %v338
      %340 = vrot.lane.b32.xlu0 %v338, 127
      %v341 = vpop.permute.xlu0 %340
      %342 = vrot.lane.b32.xlu0 %v339, 127
      %v343 = vpop.permute.xlu0 %342
      %vm344 = vcmask 1039360
      %v345 = vsel %vm344, %v341, %v343
      %vm346 = vcmask 31744
      %v348 = vsel %vm346, %v330, 0
      %vm350 = vcmask 1041408
      %v352 = vsel %vm350, %v345, 0
      %354 = vmatprep.subr.bf16.mxu0 0
      %355 = vmatpush1.bf16.msra.mxu0 %v352
      %356 = vmatprep.subr.bf16.mxu0 0
      %357 = vmatpush1.bf16.msra.mxu0 0
      %358 = vmatprep.subr.bf16.mxu0 0
      %359 = vmatpush1.bf16.msra.mxu0 0
      %360 = vmatprep.subr.bf16.mxu0 0
      %361 = vmatpush1.bf16.msra.mxu0 0
      %362 = vmatprep.subr.bf16.mxu0 0
      %363 = vmatpush1.bf16.msra.mxu0 0
      %364 = vmatprep.subr.bf16.mxu0 0
      %365 = vmatpush1.bf16.msra.mxu0 0
      %366 = vmatprep.subr.bf16.mxu0 0
      %367 = vmatpush1.bf16.msra.mxu0 0
      %368 = vmatprep.subr.bf16.mxu0 0
      %369 = vmatpush1.bf16.msra.mxu0 0
      %370 = vmatprep.subr.bf16.mxu0 0
      %371 = vmatpush1.bf16.msra.mxu0 0
      %372 = vmatprep.subr.bf16.mxu0 0
      %373 = vmatpush1.bf16.msra.mxu0 0
      %374 = vmatprep.subr.bf16.mxu0 0
      %375 = vmatpush1.bf16.msra.mxu0 0
      %376 = vmatprep.subr.bf16.mxu0 0
      %377 = vmatpush1.bf16.msra.mxu0 0
      %378 = vmatprep.subr.bf16.mxu0 0
      %379 = vmatpush1.bf16.msra.mxu0 0
      %380 = vmatprep.subr.bf16.mxu0 0
      %381 = vmatpush1.bf16.msra.mxu0 0
      %382 = vmatprep.subr.bf16.mxu0 0
      %383 = vmatpush1.bf16.msra.mxu0 0
      %384 = vmatprep.subr.bf16.mxu0 0
      %385 = vmatpush1.bf16.msra.mxu0 0
      %386 = vmatprep.mubr.bf16.mxu0 0
      %387 = vmatmul.mubr.bf16.gmra.mrb[0].mxu0 %v348
      %v388 = vpop.f32.mrb[0].mxu0
      %v389 = vadd.f32 0.0, %v388
      %v390 = vpop.f32.mrb[0].mxu0
      %v391 = vpop.f32.mrb[0].mxu0
      %v392 = vpop.f32.mrb[0].mxu0
      %393 = vdwg.mxu0
      %v395 = vsel %vm346, %v327, 0
      %v398 = vsel %vm350, %v326, 0
      %400 = vmatprep.subr.bf16.mxu0 0
      %401 = vmatpush1.bf16.msra.mxu0 %v398
      %402 = vmatprep.subr.bf16.mxu0 0
      %403 = vmatpush1.bf16.msra.mxu0 0
      %404 = vmatprep.subr.bf16.mxu0 0
      %405 = vmatpush1.bf16.msra.mxu0 0
      %406 = vmatprep.subr.bf16.mxu0 0
      %407 = vmatpush1.bf16.msra.mxu0 0
      %408 = vmatprep.subr.bf16.mxu0 0
      %409 = vmatpush1.bf16.msra.mxu0 0
      %410 = vmatprep.subr.bf16.mxu0 0
      %411 = vmatpush1.bf16.msra.mxu0 0
      %412 = vmatprep.subr.bf16.mxu0 0
      %413 = vmatpush1.bf16.msra.mxu0 0
      %414 = vmatprep.subr.bf16.mxu0 0
      %415 = vmatpush1.bf16.msra.mxu0 0
      %416 = vmatprep.subr.bf16.mxu0 0
      %417 = vmatpush1.bf16.msra.mxu0 0
      %418 = vmatprep.subr.bf16.mxu0 0
      %419 = vmatpush1.bf16.msra.mxu0 0
      %420 = vmatprep.subr.bf16.mxu0 0
      %421 = vmatpush1.bf16.msra.mxu0 0
      %422 = vmatprep.subr.bf16.mxu0 0
      %423 = vmatpush1.bf16.msra.mxu0 0
      %424 = vmatprep.subr.bf16.mxu0 0
      %425 = vmatpush1.bf16.msra.mxu0 0
      %426 = vmatprep.subr.bf16.mxu0 0
      %427 = vmatpush1.bf16.msra.mxu0 0
      %428 = vmatprep.subr.bf16.mxu0 0
      %429 = vmatpush1.bf16.msra.mxu0 0
      %430 = vmatprep.subr.bf16.mxu0 0
      %431 = vmatpush1.bf16.msra.mxu0 0
      %432 = vmatprep.mubr.bf16.mxu0 0
      %433 = vmatmul.mubr.bf16.gmra.mrb[0].mxu0 %v395
      %v434 = vpop.f32.mrb[0].mxu0
      %v435 = vadd.f32 %v389, %v434
      %v436 = vpop.f32.mrb[0].mxu0
      %v437 = vpop.f32.mrb[0].mxu0
      %v438 = vpop.f32.mrb[0].mxu0
      %439 = vdwg.mxu0
      %v440 = vld [vmem:[%s2] sm:$0xff]
      %442 = vset.pattern.permute.xlu0 0
      %443 = vperm.xlu0 %442, %v440
      %v444 = vpop.permute.xlu0 %443
      %v446 = vadd.f32 %v435, %v444
      %v447 = vmax.f32 %v446, 0.0
      %v448 = vpack.c.bf16 %v447, %v447
      %v450 = vunpack.c.l.b16 %v448
      %v451 = vpack.c.b16 %v450, %v450
      %452 = vrot.lane.b32.xlu0 %v451, 1
      %v453 = vpop.permute.xlu0 %452
      %v454 = vrot.slane %v453, 4
      %v455 = vsel %vm319, %v454, %v453
      %vm457 = vcmask 1043464
      %vm458 = vcmask 7172
      %vm459 = vmor %vm458, %vm457
      %460 = vst.msk [vmem:[#allocation3] sm:$0xff] %vm459, %v455
      %v461 = vld [vmem:[#allocation3] sm:$0xf]
      %v462 = vld [vmem:[%s3] sm:$0xf]
      %v463 = vld [vmem:[#allocation3] sm:$0xff]
      %s464 = scalar_lea.vmem %s3, 4
      %v465 = vld [vmem:[%s464] sm:$0xf]
      %v467 = vunpack.c.l.b16 %v463
      %v468 = vunpack.c.h.b16 %v463
      %v469 = vpack.c.b16 %v467, %v467
      %v470 = vpack.c.b16 %v468, %v468
      %471 = vrot.lane.b32.xlu0 %v469, 127
      %v472 = vpop.permute.xlu0 %471
      %473 = vrot.lane.b32.xlu0 %v470, 127
      %v474 = vpop.permute.xlu0 %473
      %v475 = vsel %vm344, %v472, %v474
      %vm476 = vcmask 64512
      %v478 = vsel %vm476, %v465, 0
      %vm480 = vcmask 1043456
      %v482 = vsel %vm480, %v475, 0
      %484 = vmatprep.subr.bf16.mxu0 0
      %485 = vmatpush1.bf16.msra.mxu0 %v482
      %486 = vmatprep.subr.bf16.mxu0 0
      %487 = vmatpush1.bf16.msra.mxu0 0
      %488 = vmatprep.subr.bf16.mxu0 0
      %489 = vmatpush1.bf16.msra.mxu0 0
      %490 = vmatprep.subr.bf16.mxu0 0
      %491 = vmatpush1.bf16.msra.mxu0 0
      %492 = vmatprep.subr.bf16.mxu0 0
      %493 = vmatpush1.bf16.msra.mxu0 0
      %494 = vmatprep.subr.bf16.mxu0 0
      %495 = vmatpush1.bf16.msra.mxu0 0
      %496 = vmatprep.subr.bf16.mxu0 0
      %497 = vmatpush1.bf16.msra.mxu0 0
      %498 = vmatprep.subr.bf16.mxu0 0
      %499 = vmatpush1.bf16.msra.mxu0 0
      %500 = vmatprep.subr.bf16.mxu0 0
      %501 = vmatpush1.bf16.msra.mxu0 0
      %502 = vmatprep.subr.bf16.mxu0 0
      %503 = vmatpush1.bf16.msra.mxu0 0
      %504 = vmatprep.subr.bf16.mxu0 0
      %505 = vmatpush1.bf16.msra.mxu0 0
      %506 = vmatprep.subr.bf16.mxu0 0
      %507 = vmatpush1.bf16.msra.mxu0 0
      %508 = vmatprep.subr.bf16.mxu0 0
      %509 = vmatpush1.bf16.msra.mxu0 0
      %510 = vmatprep.subr.bf16.mxu0 0
      %511 = vmatpush1.bf16.msra.mxu0 0
      %512 = vmatprep.subr.bf16.mxu0 0
      %513 = vmatpush1.bf16.msra.mxu0 0
      %514 = vmatprep.subr.bf16.mxu0 0
      %515 = vmatpush1.bf16.msra.mxu0 0
      %516 = vmatprep.mubr.bf16.mxu0 0
      %517 = vmatmul.mubr.bf16.gmra.mrb[0].mxu0 %v478
      %v518 = vpop.f32.mrb[0].mxu0
      %v519 = vadd.f32 0.0, %v518
      %v520 = vpop.f32.mrb[0].mxu0
      %v521 = vpop.f32.mrb[0].mxu0
      %v522 = vpop.f32.mrb[0].mxu0
      %523 = vdwg.mxu0
      %v525 = vsel %vm476, %v462, 0
      %v528 = vsel %vm480, %v461, 0
      %530 = vmatprep.subr.bf16.mxu0 0
      %531 = vmatpush1.bf16.msra.mxu0 %v528
      %532 = vmatprep.subr.bf16.mxu0 0
      %533 = vmatpush1.bf16.msra.mxu0 0
      %534 = vmatprep.subr.bf16.mxu0 0
      %535 = vmatpush1.bf16.msra.mxu0 0
      %536 = vmatprep.subr.bf16.mxu0 0
      %537 = vmatpush1.bf16.msra.mxu0 0
      %538 = vmatprep.subr.bf16.mxu0 0
      %539 = vmatpush1.bf16.msra.mxu0 0
      %540 = vmatprep.subr.bf16.mxu0 0
      %541 = vmatpush1.bf16.msra.mxu0 0
      %542 = vmatprep.subr.bf16.mxu0 0
      %543 = vmatpush1.bf16.msra.mxu0 0
      %544 = vmatprep.subr.bf16.mxu0 0
      %545 = vmatpush1.bf16.msra.mxu0 0
      %546 = vmatprep.subr.bf16.mxu0 0
      %547 = vmatpush1.bf16.msra.mxu0 0
      %548 = vmatprep.subr.bf16.mxu0 0
      %549 = vmatpush1.bf16.msra.mxu0 0
      %550 = vmatprep.subr.bf16.mxu0 0
      %551 = vmatpush1.bf16.msra.mxu0 0
      %552 = vmatprep.subr.bf16.mxu0 0
      %553 = vmatpush1.bf16.msra.mxu0 0
      %554 = vmatprep.subr.bf16.mxu0 0
      %555 = vmatpush1.bf16.msra.mxu0 0
      %556 = vmatprep.subr.bf16.mxu0 0
      %557 = vmatpush1.bf16.msra.mxu0 0
      %558 = vmatprep.subr.bf16.mxu0 0
      %559 = vmatpush1.bf16.msra.mxu0 0
      %560 = vmatprep.subr.bf16.mxu0 0
      %561 = vmatpush1.bf16.msra.mxu0 0
      %562 = vmatprep.mubr.bf16.mxu0 0
      %563 = vmatmul.mubr.bf16.gmra.mrb[0].mxu0 %v525
      %v564 = vpop.f32.mrb[0].mxu0
      %v565 = vadd.f32 %v519, %v564
      %v566 = vpop.f32.mrb[0].mxu0
      %v567 = vpop.f32.mrb[0].mxu0
      %v568 = vpop.f32.mrb[0].mxu0
      %569 = vdwg.mxu0
      %v570 = vld [vmem:[%s4] sm:$0xff]
      %572 = vset.pattern.permute.xlu0 0
      %573 = vperm.xlu0 %572, %v570
      %v574 = vpop.permute.xlu0 %573
      %v576 = vadd.f32 %v565, %v574
      %v577 = vmax.f32 %v576, 0.0
      %v578 = vld [vmem:[%s5] sm:$0xf]
      %v579 = vld [vmem:[%s6] sm:$0xff]
      %581 = vset.pattern.permute.xlu0 0
      %582 = vperm.xlu0 %581, %v579
      %v583 = vpop.permute.xlu0 %582
      %v586 = vsel %vm346, %v578, 0
      %v589 = vsel %vm350, %v314, 0
      %591 = vmatprep.subr.bf16.mxu0 0
      %592 = vmatpush1.bf16.msra.mxu0 %v589
      %593 = vmatprep.subr.bf16.mxu0 0
      %594 = vmatpush1.bf16.msra.mxu0 0
      %595 = vmatprep.subr.bf16.mxu0 0
      %596 = vmatpush1.bf16.msra.mxu0 0
      %597 = vmatprep.subr.bf16.mxu0 0
      %598 = vmatpush1.bf16.msra.mxu0 0
      %599 = vmatprep.subr.bf16.mxu0 0
      %600 = vmatpush1.bf16.msra.mxu0 0
      %601 = vmatprep.subr.bf16.mxu0 0
      %602 = vmatpush1.bf16.msra.mxu0 0
      %603 = vmatprep.subr.bf16.mxu0 0
      %604 = vmatpush1.bf16.msra.mxu0 0
      %605 = vmatprep.subr.bf16.mxu0 0
      %606 = vmatpush1.bf16.msra.mxu0 0
      %607 = vmatprep.subr.bf16.mxu0 0
      %608 = vmatpush1.bf16.msra.mxu0 0
      %609 = vmatprep.subr.bf16.mxu0 0
      %610 = vmatpush1.bf16.msra.mxu0 0
      %611 = vmatprep.subr.bf16.mxu0 0
      %612 = vmatpush1.bf16.msra.mxu0 0
      %613 = vmatprep.subr.bf16.mxu0 0
      %614 = vmatpush1.bf16.msra.mxu0 0
      %615 = vmatprep.subr.bf16.mxu0 0
      %616 = vmatpush1.bf16.msra.mxu0 0
      %617 = vmatprep.subr.bf16.mxu0 0
      %618 = vmatpush1.bf16.msra.mxu0 0
      %619 = vmatprep.subr.bf16.mxu0 0
      %620 = vmatpush1.bf16.msra.mxu0 0
      %621 = vmatprep.subr.bf16.mxu0 0
      %622 = vmatpush1.bf16.msra.mxu0 0
      %623 = vmatprep.mubr.bf16.mxu0 0
      %624 = vmatmul.mubr.bf16.gmra.mrb[0].mxu0 %v586
      %v625 = vpop.f32.mrb[0].mxu0
      %v626 = vadd.f32 %v583, %v625
      %v627 = vpop.f32.mrb[0].mxu0
      %v628 = vpop.f32.mrb[0].mxu0
      %v629 = vpop.f32.mrb[0].mxu0
      %630 = vdwg.mxu0
      %v631 = vadd.f32 %v577, %v626
      %v632 = vmax.f32 %v631, 0.0
      %v633 = vpack.c.bf16 %v632, %v632
      %634 = vst [vmem:[%s304] sm:$0xf] %v633
      %p635 = scmp.lt.s32.totalorder %s22, 1
      %s636 = scalar_select %p635, %s22, 1
      %p637 = scmp.lt.s32.totalorder %s23, 0
      %s638 = scalar_select %p637, %s23, 0
      %s639 = sadd.s32 %s638, %s636
      %s640 = smul.addr %s639, 4
      %s641 = scalar_lea.vmem %s7, %s640
      // Predicated region
      $region53: #{tcn_forward.2} parent=47 // pred_check
        %p642 = pneg %p204
      $region54: #{tcn_forward.2} parent=47 // pred_check_branch
        %644 = sbr.rel (%p642) target = $region56
      $region55: #{tcn_forward.2} parent=47 // pred_region
        _
      $region56: #{tcn_forward.2} parent=47 // pred_fallthru
        _
    $region48: #{tcn_forward.2} parent=5 // pred_fallthru
      _
    %p645 = scmp.le.s32.totalorder 2, %s13
    // Predicated region
    $region57: #{tcn_forward.2} parent=5 // pred_check
      %p646 = pneg %p645
    $region58: #{tcn_forward.2} parent=5 // pred_check_branch
      %648 = sbr.rel (%p646) target = $region60
    $region59: #{tcn_forward.2} parent=5 // pred_region
      %s649 = ssub.s32 %s13, 2
      // Predicated region
      $region61: #{tcn_forward.2} parent=59 // pred_check
        %p650 = pneg %p210
      $region62: #{tcn_forward.2} parent=59 // pred_check_branch
        %652 = sbr.rel (%p650) target = $region64
      $region63: #{tcn_forward.2} parent=59 // pred_region
        %p653 = scmp.lt.s32.totalorder %s24, 1
        %s654 = scalar_select %p653, %s24, 1
        %p655 = scmp.lt.s32.totalorder %s25, 0
        %s656 = scalar_select %p655, %s25, 0
        %s657 = sadd.s32 %s656, %s654
        %s658 = smul.addr %s657, 4
        %s659 = scalar_lea.vmem %s7, %s658
      $region64: #{tcn_forward.2} parent=59 // pred_fallthru
        _
    $region60: #{tcn_forward.2} parent=5 // pred_fallthru
      _
  $region6: #{tcn_forward.2} parent=0 // loop_footer
    %s17 = sadd.s32 1, %s13
  $region7: #{tcn_forward.2} parent=0 // loop_footer_branch
    %12 = sbr.rel target = $region3
  $region8: #{tcn_forward.2} parent=0 // loop_exit
    _

// kernel: tcn_forward.3
$region0: #{tcn_forward.3}
  #allocation0 [shape = 'u32[]', space=smem, size = 0x4, offset = 0x4, fixed_abs, tag = 'smem constant byte address 0x4 - core index']
  #allocation1 [shape = 'u32[144,128]{1,0:T(1,128)}', space=vmem, size = 0x12000, scoped, tag = 'internal scratch']
  #allocation2 [shape = 'bf16[8,130]{1,0:T(8,128)(2,1)}', space=vmem, size = 0x1000, scoped, tag = 'scratch operand']
  #allocation3 [shape = 'bf16[8,130]{1,0:T(8,128)(2,1)}', space=vmem, size = 0x1000, scoped, tag = 'scratch operand']
  %s0 = inlined_call_operand.vmem [shape: bf16[2,8,128], index: 0, kind: input, shape index: {}]
  %s1 = inlined_call_operand.vmem [shape: bf16[2,8,8], index: 1, kind: input, shape index: {}]
  %s2 = inlined_call_operand.vmem [shape: f32[8,1], index: 2, kind: input, shape index: {}]
  %s3 = inlined_call_operand.vmem [shape: bf16[2,8,8], index: 3, kind: input, shape index: {}]
  %s4 = inlined_call_operand.vmem [shape: f32[8,1], index: 4, kind: input, shape index: {}]
  %s5 = inlined_call_operand.vmem [shape: bf16[2,8,128], index: 5, kind: output, shape index: {}]
  %s6 = sld [smem:[#allocation0]]
  $region57: #{tcn_forward.3} parent=0
    _
  %s8 = ssub.s32 1, %s6
  %s9 = scalar_select 0, %s8, %s6
  loop: start=0, step=1, limit=4
  $region2: #{tcn_forward.3} parent=0 // loop_pre_header
    _
  $region3: #{tcn_forward.3} parent=0 // loop_header
    %s11 = sphi 0, %s15
    %p12 = scmp.ge.s32.totalorder %s11, 4
    %s18 = sphi 0, %s30
    %s19 = sphi 0, %s26
    %s20 = sphi 0, %s18
    %s21 = sphi 0, %s19
    %s22 = sphi 0, %s20
    %s23 = sphi 0, %s21
    %s35 = sphi 0, %s37
    %s38 = sphi 0, %s35
    %s39 = sphi 0, %s38
    %s55 = sphi 0, %s39
    %s59 = sphi 0, %s59
    %s61 = sphi 0, %s59
    %s62 = sphi 0, %s61
    %s76 = sphi 0, %s62
    %s80 = sphi 0, %s80
    %s82 = sphi 0, %s80
    %s83 = sphi 0, %s82
    %s97 = sphi 0, %s83
    %s101 = sphi 0, %s101
    %s103 = sphi 0, %s101
    %s104 = sphi 0, %s103
    %s118 = sphi 0, %s104
    %s122 = sphi 0, %s122
    %s124 = sphi 0, %s122
    %s125 = sphi 0, %s124
    %s139 = sphi 0, %s125
    %s147 = sphi 0, %s149
    %s150 = sphi 0, %s147
    %s151 = sphi 0, %s150
    %s167 = sphi 0, %s151
  $region4: #{tcn_forward.3} parent=0 // loop_header_branch
    %14 = sbr.rel (%p12) target = $region8
  $region5: #{tcn_forward.3} parent=0 // loop_body
    %s16 = ssub.s32 %s11, 1
    %s17 = ssub.s32 %s11, 2
    %s24 = sadd.s32 1, %s19
    %p25 = scmp.ge.s32.totalorder %s24, 1
    %s26 = scalar_select %p25, 0, %s24
    %s27 = sadd.s32 1, %s18
    %s28 = scalar_select %p25, %s27, %s18
    %p29 = scmp.ge.s32.totalorder %s28, 2
    %s30 = scalar_select %p29, 0, %s28
    %s31 = ssub.s32 %s18, %s30
    %s32 = ssub.s32 %s19, %s26
    %s33 = sor.u32 %s31, %s32
    %p34 = scmp.eq.s32.totalorder %s33, 0
    %s36 = sadd.s32 %s35, 1
    %s37 = scalar_select %p34, %s35, %s36
    %p40 = pneg %p34
    %p41 = scmp.eq.s32.totalorder %s11, 1
    %p42 = por %p40, %p41
    %p43 = scmp.ne.s32.totalorder %s35, %s38
    %p44 = scmp.eq.s32.totalorder %s11, 0
    %p45 = por %p43, %p44
    %p46 = scmp.ne.s32.totalorder %s35, %s38
    %p47 = scmp.eq.s32.totalorder %s16, 1
    %p48 = por %p46, %p47
    %p49 = scmp.ne.s32.totalorder %s38, %s39
    %p50 = scmp.eq.s32.totalorder %s16, 0
    %p51 = por %p49, %p50
    %p52 = scmp.ne.s32.totalorder %s38, %s39
    %p53 = scmp.eq.s32.totalorder %s17, 1
    %p54 = por %p52, %p53
    %p56 = scmp.ne.s32.totalorder %s39, %s55
    %p57 = scmp.eq.s32.totalorder %s17, 0
    %p58 = por %p56, %p57
    %s60 = sadd.s32 %s59, 1
    %p63 = scmp.eq.s32.totalorder %s11, 1
    %p64 = scmp.ne.s32.totalorder %s59, %s61
    %p65 = scmp.eq.s32.totalorder %s11, 0
    %p66 = por %p64, %p65
    %p67 = scmp.ne.s32.totalorder %s59, %s61
    %p68 = scmp.eq.s32.totalorder %s16, 1
    %p69 = por %p67, %p68
    %p70 = scmp.ne.s32.totalorder %s61, %s62
    %p71 = scmp.eq.s32.totalorder %s16, 0
    %p72 = por %p70, %p71
    %p73 = scmp.ne.s32.totalorder %s61, %s62
    %p74 = scmp.eq.s32.totalorder %s17, 1
    %p75 = por %p73, %p74
    %p77 = scmp.ne.s32.totalorder %s62, %s76
    %p78 = scmp.eq.s32.totalorder %s17, 0
    %p79 = por %p77, %p78
    %s81 = sadd.s32 %s80, 1
    %p84 = scmp.eq.s32.totalorder %s11, 1
    %p85 = scmp.ne.s32.totalorder %s80, %s82
    %p86 = scmp.eq.s32.totalorder %s11, 0
    %p87 = por %p85, %p86
    %p88 = scmp.ne.s32.totalorder %s80, %s82
    %p89 = scmp.eq.s32.totalorder %s16, 1
    %p90 = por %p88, %p89
    %p91 = scmp.ne.s32.totalorder %s82, %s83
    %p92 = scmp.eq.s32.totalorder %s16, 0
    %p93 = por %p91, %p92
    %p94 = scmp.ne.s32.totalorder %s82, %s83
    %p95 = scmp.eq.s32.totalorder %s17, 1
    %p96 = por %p94, %p95
    %p98 = scmp.ne.s32.totalorder %s83, %s97
    %p99 = scmp.eq.s32.totalorder %s17, 0
    %p100 = por %p98, %p99
    %s102 = sadd.s32 %s101, 1
    %p105 = scmp.eq.s32.totalorder %s11, 1
    %p106 = scmp.ne.s32.totalorder %s101, %s103
    %p107 = scmp.eq.s32.totalorder %s11, 0
    %p108 = por %p106, %p107
    %p109 = scmp.ne.s32.totalorder %s101, %s103
    %p110 = scmp.eq.s32.totalorder %s16, 1
    %p111 = por %p109, %p110
    %p112 = scmp.ne.s32.totalorder %s103, %s104
    %p113 = scmp.eq.s32.totalorder %s16, 0
    %p114 = por %p112, %p113
    %p115 = scmp.ne.s32.totalorder %s103, %s104
    %p116 = scmp.eq.s32.totalorder %s17, 1
    %p117 = por %p115, %p116
    %p119 = scmp.ne.s32.totalorder %s104, %s118
    %p120 = scmp.eq.s32.totalorder %s17, 0
    %p121 = por %p119, %p120
    %s123 = sadd.s32 %s122, 1
    %p126 = scmp.eq.s32.totalorder %s11, 1
    %p127 = scmp.ne.s32.totalorder %s122, %s124
    %p128 = scmp.eq.s32.totalorder %s11, 0
    %p129 = por %p127, %p128
    %p130 = scmp.ne.s32.totalorder %s122, %s124
    %p131 = scmp.eq.s32.totalorder %s16, 1
    %p132 = por %p130, %p131
    %p133 = scmp.ne.s32.totalorder %s124, %s125
    %p134 = scmp.eq.s32.totalorder %s16, 0
    %p135 = por %p133, %p134
    %p136 = scmp.ne.s32.totalorder %s124, %s125
    %p137 = scmp.eq.s32.totalorder %s17, 1
    %p138 = por %p136, %p137
    %p140 = scmp.ne.s32.totalorder %s125, %s139
    %p141 = scmp.eq.s32.totalorder %s17, 0
    %p142 = por %p140, %p141
    %s143 = ssub.s32 %s18, %s30
    %s144 = ssub.s32 %s19, %s26
    %s145 = sor.u32 %s143, %s144
    %p146 = scmp.eq.s32.totalorder %s145, 0
    %s148 = sadd.s32 %s147, 1
    %s149 = scalar_select %p146, %s147, %s148
    %p152 = pneg %p146
    %p153 = scmp.eq.s32.totalorder %s11, 1
    %p154 = por %p152, %p153
    %p155 = scmp.ne.s32.totalorder %s147, %s150
    %p156 = scmp.eq.s32.totalorder %s11, 0
    %p157 = por %p155, %p156
    %p158 = scmp.ne.s32.totalorder %s147, %s150
    %p159 = scmp.eq.s32.totalorder %s16, 1
    %p160 = por %p158, %p159
    %p161 = scmp.ne.s32.totalorder %s150, %s151
    %p162 = scmp.eq.s32.totalorder %s16, 0
    %p163 = por %p161, %p162
    %p164 = scmp.ne.s32.totalorder %s150, %s151
    %p165 = scmp.eq.s32.totalorder %s17, 1
    %p166 = por %p164, %p165
    %p168 = scmp.ne.s32.totalorder %s151, %s167
    %p169 = scmp.eq.s32.totalorder %s17, 0
    %p170 = por %p168, %p169
    %p171 = scmp.le.s32.totalorder 1, %s11
    %p172 = scmp.lt.s32.totalorder %s11, 3
    %p173 = pnand %p171, %p172
    %p174 = pneg %p173
    // Predicated region
    $region9: #{tcn_forward.3} parent=5 // pred_check
      _
    $region10: #{tcn_forward.3} parent=5 // pred_check_branch
      %176 = sbr.rel (%p173) target = $region12
    $region11: #{tcn_forward.3} parent=5 // pred_region
      %s177 = ssub.s32 %s11, 1
      // Predicated region
      $region13: #{tcn_forward.3} parent=11 // pred_check
        %p178 = pneg %p72
      $region14: #{tcn_forward.3} parent=11 // pred_check_branch
        %180 = sbr.rel (%p178) target = $region16
      $region15: #{tcn_forward.3} parent=11 // pred_region
        _
      $region16: #{tcn_forward.3} parent=11 // pred_fallthru
        _
      // Predicated region
      $region17: #{tcn_forward.3} parent=11 // pred_check
        %p181 = pneg %p93
      $region18: #{tcn_forward.3} parent=11 // pred_check_branch
        %183 = sbr.rel (%p181) target = $region20
      $region19: #{tcn_forward.3} parent=11 // pred_region
        _
      $region20: #{tcn_forward.3} parent=11 // pred_fallthru
        _
      // Predicated region
      $region21: #{tcn_forward.3} parent=11 // pred_check
        %p184 = pneg %p114
      $region22: #{tcn_forward.3} parent=11 // pred_check_branch
        %186 = sbr.rel (%p184) target = $region24
      $region23: #{tcn_forward.3} parent=11 // pred_region
        _
      $region24: #{tcn_forward.3} parent=11 // pred_fallthru
        _
      // Predicated region
      $region25: #{tcn_forward.3} parent=11 // pred_check
        %p187 = pneg %p135
      $region26: #{tcn_forward.3} parent=11 // pred_check_branch
        %189 = sbr.rel (%p187) target = $region28
      $region27: #{tcn_forward.3} parent=11 // pred_region
        _
      $region28: #{tcn_forward.3} parent=11 // pred_fallthru
        _
    $region12: #{tcn_forward.3} parent=5 // pred_fallthru
      _
    %p190 = scmp.lt.s32.totalorder %s11, 2
    // Predicated region
    $region29: #{tcn_forward.3} parent=5 // pred_check
      %p191 = pneg %p190
    $region30: #{tcn_forward.3} parent=5 // pred_check_branch
      %193 = sbr.rel (%p191) target = $region32
    $region31: #{tcn_forward.3} parent=5 // pred_region
      // Predicated region
      $region33: #{tcn_forward.3} parent=31 // pred_check
        %p194 = pneg %p45
      $region34: #{tcn_forward.3} parent=31 // pred_check_branch
        %196 = sbr.rel (%p194) target = $region36
      $region35: #{tcn_forward.3} parent=31 // pred_region
        %p197 = scmp.lt.s32.totalorder %s18, 1
        %s198 = scalar_select %p197, %s18, 1
        %p199 = scmp.lt.s32.totalorder %s19, 0
        %s200 = scalar_select %p199, %s19, 0
        %s201 = sadd.s32 %s200, %s198
        %s202 = smul.addr %s201, 4
        %s203 = scalar_lea.vmem %s0, %s202
      $region36: #{tcn_forward.3} parent=31 // pred_fallthru
        _
    $region32: #{tcn_forward.3} parent=5 // pred_fallthru
      _
    %p204 = scmp.le.s32.totalorder 1, %s11
    %p205 = scmp.lt.s32.totalorder %s11, 3
    %p206 = pnand %p204, %p205
    %p207 = pneg %p206
    // Predicated region
    $region37: #{tcn_forward.3} parent=5 // pred_check
      _
    $region38: #{tcn_forward.3} parent=5 // pred_check_branch
      %209 = sbr.rel (%p206) target = $region40
    $region39: #{tcn_forward.3} parent=5 // pred_region
      %s210 = ssub.s32 %s11, 1
      %p211 = scmp.lt.s32.totalorder %s20, 1
      %s212 = scalar_select %p211, %s20, 1
      %p213 = scmp.lt.s32.totalorder %s21, 0
      %s214 = scalar_select %p213, %s21, 0
      %s215 = sadd.s32 %s214, %s212
      %s216 = smul.addr %s215, 4
      %s217 = scalar_lea.vmem %s0, %s216
      %p218 = pneg %p51
      %p219 = pneg %p48
      %p220 = pneg %p72
      %p221 = pneg %p69
      %p222 = pneg %p93
      %p223 = pneg %p90
      %p224 = pneg %p114
      %p225 = pneg %p111
      %p226 = pneg %p135
      %p227 = pneg %p132
      %p228 = pneg %p163
      %p229 = pneg %p160
      %p230 = scmp.lt.s32.totalorder %s20, 1
      %s231 = scalar_select %p230, %s20, 1
      %p232 = scmp.lt.s32.totalorder %s21, 0
      %s233 = scalar_select %p232, %s21, 0
      %s234 = sadd.s32 %s233, %s231
      %s235 = smul.addr %s234, 4
      %s236 = scalar_lea.vmem %s5, %s235
      %p237 = scmp.lt.s32.totalorder %s20, 1
      %s238 = scalar_select %p237, %s20, 1
      %p239 = scmp.lt.s32.totalorder %s21, 0
      %s240 = scalar_select %p239, %s21, 0
      %s241 = sadd.s32 %s240, %s238
      %s242 = smul.addr %s241, 4
      %s243 = scalar_lea.vmem %s0, %s242
      %p244 = scmp.lt.s32.totalorder %s20, 1
      %s245 = scalar_select %p244, %s20, 1
      %p246 = scmp.lt.s32.totalorder %s21, 0
      %s247 = scalar_select %p246, %s21, 0
      %s248 = sadd.s32 %s247, %s245
      %s249 = smul.addr %s248, 4
      %s250 = scalar_lea.vmem %s5, %s249
      %p252 = scmp.eq.s32.totalorder %s21, 0
      // Predicated region
      $region41: #{tcn_forward.3} parent=39 // pred_check
        %p253 = pneg %p252
      $region42: #{tcn_forward.3} parent=39 // pred_check_branch
        %255 = sbr.rel (%p253) target = $region44
      $region43: #{tcn_forward.3} parent=39 // pred_region
        %vm256 = vcmask 11264
        %257 = vst.msk [vmem:[#allocation2] sm:$0xf] %vm256, 0
        %258 = vst.msk [vmem:[#allocation3] sm:$0xf] %vm256, 0
      $region44: #{tcn_forward.3} parent=39 // pred_fallthru
        _
      %v259 = vld [vmem:[%s243] sm:$0xf]
      %261 = vrot.lane.b32.xlu0 %v259, 2
      %v262 = vpop.permute.xlu0 %261
      %v263 = vrot.slane %v262, 4
      %vm264 = vcmask 15360
      %v265 = vsel %vm264, %v263, %v262
      %vm267 = vcmask 1043472
      %vm268 = vcmask 15364
      %vm269 = vmor %vm268, %vm267
      %270 = vst.msk [vmem:[#allocation2] sm:$0xff] %vm269, %v265
      %v271 = vld [vmem:[#allocation2] sm:$0xf]
      %v272 = vld [vmem:[%s1] sm:$0xf]
      %v273 = vld [vmem:[#allocation2] sm:$0xff]
      %s274 = scalar_lea.vmem %s1, 4
      %v275 = vld [vmem:[%s274] sm:$0xf]
      %v277 = vunpack.c.l.b16 %v273
      %v278 = vunpack.c.h.b16 %v273
      %v279 = vpack.c.b16 %v277, %v277
      %v280 = vpack.c.b16 %v278, %v278
      %281 = vrot.lane.b32.xlu0 %v279, 126
      %v282 = vpop.permute.xlu0 %281
      %283 = vrot.lane.b32.xlu0 %v280, 126
      %v284 = vpop.permute.xlu0 %283
      %vm285 = vcmask 1031168
      %v286 = vsel %vm285, %v282, %v284
      %vm287 = vcmask 64512
      %v289 = vsel %vm287, %v275, 0
      %vm291 = vcmask 1043456
      %v293 = vsel %vm291, %v286, 0
      %295 = vmatprep.subr.bf16.mxu0 0
      %296 = vmatpush1.bf16.msra.mxu0 %v293
      %297 = vmatprep.subr.bf16.mxu0 0
      %298 = vmatpush1.bf16.msra.mxu0 0
      %299 = vmatprep.subr.bf16.mxu0 0
      %300 = vmatpush1.bf16.msra.mxu0 0
      %301 = vmatprep.subr.bf16.mxu0 0
      %302 = vmatpush1.bf16.msra.mxu0 0
      %303 = vmatprep.subr.bf16.mxu0 0
      %304 = vmatpush1.bf16.msra.mxu0 0
      %305 = vmatprep.subr.bf16.mxu0 0
      %306 = vmatpush1.bf16.msra.mxu0 0
      %307 = vmatprep.subr.bf16.mxu0 0
      %308 = vmatpush1.bf16.msra.mxu0 0
      %309 = vmatprep.subr.bf16.mxu0 0
      %310 = vmatpush1.bf16.msra.mxu0 0
      %311 = vmatprep.subr.bf16.mxu0 0
      %312 = vmatpush1.bf16.msra.mxu0 0
      %313 = vmatprep.subr.bf16.mxu0 0
      %314 = vmatpush1.bf16.msra.mxu0 0
      %315 = vmatprep.subr.bf16.mxu0 0
      %316 = vmatpush1.bf16.msra.mxu0 0
      %317 = vmatprep.subr.bf16.mxu0 0
      %318 = vmatpush1.bf16.msra.mxu0 0
      %319 = vmatprep.subr.bf16.mxu0 0
      %320 = vmatpush1.bf16.msra.mxu0 0
      %321 = vmatprep.subr.bf16.mxu0 0
      %322 = vmatpush1.bf16.msra.mxu0 0
      %323 = vmatprep.subr.bf16.mxu0 0
      %324 = vmatpush1.bf16.msra.mxu0 0
      %325 = vmatprep.subr.bf16.mxu0 0
      %326 = vmatpush1.bf16.msra.mxu0 0
      %327 = vmatprep.mubr.bf16.mxu0 0
      %328 = vmatmul.mubr.bf16.gmra.mrb[0].mxu0 %v289
      %v329 = vpop.f32.mrb[0].mxu0
      %v330 = vadd.f32 0.0, %v329
      %v331 = vpop.f32.mrb[0].mxu0
      %v332 = vpop.f32.mrb[0].mxu0
      %v333 = vpop.f32.mrb[0].mxu0
      %334 = vdwg.mxu0
      %v336 = vsel %vm287, %v272, 0
      %v339 = vsel %vm291, %v271, 0
      %341 = vmatprep.subr.bf16.mxu0 0
      %342 = vmatpush1.bf16.msra.mxu0 %v339
      %343 = vmatprep.subr.bf16.mxu0 0
      %344 = vmatpush1.bf16.msra.mxu0 0
      %345 = vmatprep.subr.bf16.mxu0 0
      %346 = vmatpush1.bf16.msra.mxu0 0
      %347 = vmatprep.subr.bf16.mxu0 0
      %348 = vmatpush1.bf16.msra.mxu0 0
      %349 = vmatprep.subr.bf16.mxu0 0
      %350 = vmatpush1.bf16.msra.mxu0 0
      %351 = vmatprep.subr.bf16.mxu0 0
      %352 = vmatpush1.bf16.msra.mxu0 0
      %353 = vmatprep.subr.bf16.mxu0 0
      %354 = vmatpush1.bf16.msra.mxu0 0
      %355 = vmatprep.subr.bf16.mxu0 0
      %356 = vmatpush1.bf16.msra.mxu0 0
      %357 = vmatprep.subr.bf16.mxu0 0
      %358 = vmatpush1.bf16.msra.mxu0 0
      %359 = vmatprep.subr.bf16.mxu0 0
      %360 = vmatpush1.bf16.msra.mxu0 0
      %361 = vmatprep.subr.bf16.mxu0 0
      %362 = vmatpush1.bf16.msra.mxu0 0
      %363 = vmatprep.subr.bf16.mxu0 0
      %364 = vmatpush1.bf16.msra.mxu0 0
      %365 = vmatprep.subr.bf16.mxu0 0
      %366 = vmatpush1.bf16.msra.mxu0 0
      %367 = vmatprep.subr.bf16.mxu0 0
      %368 = vmatpush1.bf16.msra.mxu0 0
      %369 = vmatprep.subr.bf16.mxu0 0
      %370 = vmatpush1.bf16.msra.mxu0 0
      %371 = vmatprep.subr.bf16.mxu0 0
      %372 = vmatpush1.bf16.msra.mxu0 0
      %373 = vmatprep.mubr.bf16.mxu0 0
      %374 = vmatmul.mubr.bf16.gmra.mrb[0].mxu0 %v336
      %v375 = vpop.f32.mrb[0].mxu0
      %v376 = vadd.f32 %v330, %v375
      %v377 = vpop.f32.mrb[0].mxu0
      %v378 = vpop.f32.mrb[0].mxu0
      %v379 = vpop.f32.mrb[0].mxu0
      %380 = vdwg.mxu0
      %v381 = vld [vmem:[%s2] sm:$0xff]
      %383 = vset.pattern.permute.xlu0 0
      %384 = vperm.xlu0 %383, %v381
      %v385 = vpop.permute.xlu0 %384
      %v387 = vadd.f32 %v376, %v385
      %v388 = vmax.f32 %v387, 0.0
      %v389 = vpack.c.bf16 %v388, %v388
      %v391 = vunpack.c.l.b16 %v389
      %v392 = vpack.c.b16 %v391, %v391
      %393 = vrot.lane.b32.xlu0 %v392, 2
      %v394 = vpop.permute.xlu0 %393
      %v395 = vrot.slane %v394, 4
      %v396 = vsel %vm264, %v395, %v394
      %398 = vst.msk [vmem:[#allocation3] sm:$0xff] %vm269, %v396
      %v399 = vld [vmem:[#allocation3] sm:$0xf]
      %v400 = vld [vmem:[%s3] sm:$0xf]
      %v401 = vld [vmem:[#allocation3] sm:$0xff]
      %s402 = scalar_lea.vmem %s3, 4
      %v403 = vld [vmem:[%s402] sm:$0xf]
      %v405 = vunpack.c.l.b16 %v401
      %v406 = vunpack.c.h.b16 %v401
      %v407 = vpack.c.b16 %v405, %v405
      %v408 = vpack.c.b16 %v406, %v406
      %409 = vrot.lane.b32.xlu0 %v407, 126
      %v410 = vpop.permute.xlu0 %409
      %411 = vrot.lane.b32.xlu0 %v408, 126
      %v412 = vpop.permute.xlu0 %411
      %v413 = vsel %vm285, %v410, %v412
      %v415 = vsel %vm287, %v403, 0
      %v418 = vsel %vm291, %v413, 0
      %420 = vmatprep.subr.bf16.mxu0 0
      %421 = vmatpush1.bf16.msra.mxu0 %v418
      %422 = vmatprep.subr.bf16.mxu0 0
      %423 = vmatpush1.bf16.msra.mxu0 0
      %424 = vmatprep.subr.bf16.mxu0 0
      %425 = vmatpush1.bf16.msra.mxu0 0
      %426 = vmatprep.subr.bf16.mxu0 0
      %427 = vmatpush1.bf16.msra.mxu0 0
      %428 = vmatprep.subr.bf16.mxu0 0
      %429 = vmatpush1.bf16.msra.mxu0 0
      %430 = vmatprep.subr.bf16.mxu0 0
      %431 = vmatpush1.bf16.msra.mxu0 0
      %432 = vmatprep.subr.bf16.mxu0 0
      %433 = vmatpush1.bf16.msra.mxu0 0
      %434 = vmatprep.subr.bf16.mxu0 0
      %435 = vmatpush1.bf16.msra.mxu0 0
      %436 = vmatprep.subr.bf16.mxu0 0
      %437 = vmatpush1.bf16.msra.mxu0 0
      %438 = vmatprep.subr.bf16.mxu0 0
      %439 = vmatpush1.bf16.msra.mxu0 0
      %440 = vmatprep.subr.bf16.mxu0 0
      %441 = vmatpush1.bf16.msra.mxu0 0
      %442 = vmatprep.subr.bf16.mxu0 0
      %443 = vmatpush1.bf16.msra.mxu0 0
      %444 = vmatprep.subr.bf16.mxu0 0
      %445 = vmatpush1.bf16.msra.mxu0 0
      %446 = vmatprep.subr.bf16.mxu0 0
      %447 = vmatpush1.bf16.msra.mxu0 0
      %448 = vmatprep.subr.bf16.mxu0 0
      %449 = vmatpush1.bf16.msra.mxu0 0
      %450 = vmatprep.subr.bf16.mxu0 0
      %451 = vmatpush1.bf16.msra.mxu0 0
      %452 = vmatprep.mubr.bf16.mxu0 0
      %453 = vmatmul.mubr.bf16.gmra.mrb[0].mxu0 %v415
      %v454 = vpop.f32.mrb[0].mxu0
      %v455 = vadd.f32 0.0, %v454
      %v456 = vpop.f32.mrb[0].mxu0
      %v457 = vpop.f32.mrb[0].mxu0
      %v458 = vpop.f32.mrb[0].mxu0
      %459 = vdwg.mxu0
      %v461 = vsel %vm287, %v400, 0
      %v464 = vsel %vm291, %v399, 0
      %466 = vmatprep.subr.bf16.mxu0 0
      %467 = vmatpush1.bf16.msra.mxu0 %v464
      %468 = vmatprep.subr.bf16.mxu0 0
      %469 = vmatpush1.bf16.msra.mxu0 0
      %470 = vmatprep.subr.bf16.mxu0 0
      %471 = vmatpush1.bf16.msra.mxu0 0
      %472 = vmatprep.subr.bf16.mxu0 0
      %473 = vmatpush1.bf16.msra.mxu0 0
      %474 = vmatprep.subr.bf16.mxu0 0
      %475 = vmatpush1.bf16.msra.mxu0 0
      %476 = vmatprep.subr.bf16.mxu0 0
      %477 = vmatpush1.bf16.msra.mxu0 0
      %478 = vmatprep.subr.bf16.mxu0 0
      %479 = vmatpush1.bf16.msra.mxu0 0
      %480 = vmatprep.subr.bf16.mxu0 0
      %481 = vmatpush1.bf16.msra.mxu0 0
      %482 = vmatprep.subr.bf16.mxu0 0
      %483 = vmatpush1.bf16.msra.mxu0 0
      %484 = vmatprep.subr.bf16.mxu0 0
      %485 = vmatpush1.bf16.msra.mxu0 0
      %486 = vmatprep.subr.bf16.mxu0 0
      %487 = vmatpush1.bf16.msra.mxu0 0
      %488 = vmatprep.subr.bf16.mxu0 0
      %489 = vmatpush1.bf16.msra.mxu0 0
      %490 = vmatprep.subr.bf16.mxu0 0
      %491 = vmatpush1.bf16.msra.mxu0 0
      %492 = vmatprep.subr.bf16.mxu0 0
      %493 = vmatpush1.bf16.msra.mxu0 0
      %494 = vmatprep.subr.bf16.mxu0 0
      %495 = vmatpush1.bf16.msra.mxu0 0
      %496 = vmatprep.subr.bf16.mxu0 0
      %497 = vmatpush1.bf16.msra.mxu0 0
      %498 = vmatprep.mubr.bf16.mxu0 0
      %499 = vmatmul.mubr.bf16.gmra.mrb[0].mxu0 %v461
      %v500 = vpop.f32.mrb[0].mxu0
      %v501 = vadd.f32 %v455, %v500
      %v502 = vpop.f32.mrb[0].mxu0
      %v503 = vpop.f32.mrb[0].mxu0
      %v504 = vpop.f32.mrb[0].mxu0
      %505 = vdwg.mxu0
      %v506 = vld [vmem:[%s4] sm:$0xff]
      %508 = vset.pattern.permute.xlu0 0
      %509 = vperm.xlu0 %508, %v506
      %v510 = vpop.permute.xlu0 %509
      %v512 = vadd.f32 %v501, %v510
      %v513 = vmax.f32 %v512, 0.0
      %v514 = vunpack.c.l.bf16 %v259
      %v515 = vadd.f32 %v513, %v514
      %v516 = vmax.f32 %v515, 0.0
      %v517 = vpack.c.bf16 %v516, %v516
      %518 = vst [vmem:[%s250] sm:$0xf] %v517
      %p519 = scmp.lt.s32.totalorder %s20, 1
      %s520 = scalar_select %p519, %s20, 1
      %p521 = scmp.lt.s32.totalorder %s21, 0
      %s522 = scalar_select %p521, %s21, 0
      %s523 = sadd.s32 %s522, %s520
      %s524 = smul.addr %s523, 4
      %s525 = scalar_lea.vmem %s5, %s524
      // Predicated region
      $region45: #{tcn_forward.3} parent=39 // pred_check
        %p526 = pneg %p160
      $region46: #{tcn_forward.3} parent=39 // pred_check_branch
        %528 = sbr.rel (%p526) target = $region48
      $region47: #{tcn_forward.3} parent=39 // pred_region
        _
      $region48: #{tcn_forward.3} parent=39 // pred_fallthru
        _
    $region40: #{tcn_forward.3} parent=5 // pred_fallthru
      _
    %p529 = scmp.le.s32.totalorder 2, %s11
    // Predicated region
    $region49: #{tcn_forward.3} parent=5 // pred_check
      %p530 = pneg %p529
    $region50: #{tcn_forward.3} parent=5 // pred_check_branch
      %532 = sbr.rel (%p530) target = $region52
    $region51: #{tcn_forward.3} parent=5 // pred_region
      %s533 = ssub.s32 %s11, 2
      // Predicated region
      $region53: #{tcn_forward.3} parent=51 // pred_check
        %p534 = pneg %p166
      $region54: #{tcn_forward.3} parent=51 // pred_check_branch
        %536 = sbr.rel (%p534) target = $region56
      $region55: #{tcn_forward.3} parent=51 // pred_region
        %p537 = scmp.lt.s32.totalorder %s22, 1
        %s538 = scalar_select %p537, %s22, 1
        %p539 = scmp.lt.s32.totalorder %s23, 0
        %s540 = scalar_select %p539, %s23, 0
        %s541 = sadd.s32 %s540, %s538
        %s542 = smul.addr %s541, 4
        %s543 = scalar_lea.vmem %s5, %s542
      $region56: #{tcn_forward.3} parent=51 // pred_fallthru
        _
    $region52: #{tcn_forward.3} parent=5 // pred_fallthru
      _
  $region6: #{tcn_forward.3} parent=0 // loop_footer
    %s15 = sadd.s32 1, %s11
  $region7: #{tcn_forward.3} parent=0 // loop_footer_branch
    %10 = sbr.rel target = $region3
  $region8: #{tcn_forward.3} parent=0 // loop_exit
    _

</llo_original>
